<compile_context>
chip_gen: v7x
topology: tpu7x:2x2x1
jax: 0.10.0
libtpu: 0.0.40
codegen_flags: <defaults>
</compile_context>

<pallas_src>
import functools
import math

import jax
import jax.numpy as jnp
from jax import lax
from jax.experimental import pallas as pl
from jax.experimental.pallas import tpu as pltpu

MIB = 1024 * 1024


# ---------------------------------------------------------------------------
# kernel body (grid = (batch block i, Tk chunk j); online softmax over j)
# ---------------------------------------------------------------------------
def _attention_body(q_ref, mem_ref, bias, wq_ref, bq_ref, wk_ref, bk_ref,
                    wv_ref, bv_ref, out_ref, qh_s, m_s, l_s, acc_s,
                    *, tk_valid, tk_pad, h_dtype):
    BB, TKC, K = mem_ref.shape
    H = wq_ref.shape[1]
    j = pl.program_id(1)

    @pl.when(j == 0)
    def _init():
        # query projection once per batch block; accumulators reset.
        qh_s[...] = (jnp.dot(q_ref[...], wq_ref[...],
                             preferred_element_type=jnp.float32) + bq_ref[...])
        m_s[...] = jnp.full(m_s.shape, -1e30, jnp.float32)
        l_s[...] = jnp.zeros(l_s.shape, jnp.float32)
        acc_s[...] = jnp.zeros(acc_s.shape, jnp.float32)

    mem_c = mem_ref[...]                                   # [BB, TKC, K]  bf16

    # key projection for this Tk chunk (MXU, f32 accumulation).
    kh = jnp.dot(mem_c.reshape(BB * TKC, K), wk_ref[...],
                 preferred_element_type=jnp.float32) + bk_ref[...]

    # tanh + wv reduce; h_dtype is bf16 on bf16-native VPU/EUP parts, f32 on v5e.
    h = jnp.tanh((kh.reshape(BB, TKC, H) + qh_s[...][:, None, :]).astype(h_dtype))
    lg = jnp.sum(h * wv_ref[...].astype(h_dtype)[None, :, :], axis=-1,
                 dtype=jnp.float32)                        # [BB, TKC]
    lg = lg + bv_ref[...]                                  # scalar (cancels in softmax)
    if bias is not None:
        lg = lg + bias.astype(jnp.float32)
    if tk_pad != tk_valid:                                 # mask padded Tk rows
        pos = j * TKC + lax.broadcasted_iota(jnp.int32, (BB, TKC), 1)
        lg = jnp.where(pos < tk_valid, lg, -1e30)

    # online softmax update.
    m_prev = m_s[...]
    m_new = jnp.maximum(m_prev, jnp.max(lg, axis=-1, keepdims=True))
    alpha = jnp.exp(m_prev - m_new)
    p = jnp.exp(lg - m_new)                                # [BB, TKC] f32
    l_s[...] = alpha * l_s[...] + jnp.sum(p, axis=-1, keepdims=True)

    # weighted sum of this memory chunk on the MXU -- no f32 copy of mem_c.
    pv = jnp.einsum('bqt,btk->bqk', p.astype(mem_c.dtype)[:, None, :], mem_c,
                    preferred_element_type=jnp.float32)[:, 0, :]   # [BB, K]
    acc_s[...] = alpha * acc_s[...] + pv
    m_s[...] = m_new

    @pl.when(j == pl.num_programs(1) - 1)
    def _finalize():
        out_ref[...] = (acc_s[...] * pl.reciprocal(l_s[...], approx=True)
                        ).astype(out_ref.dtype)


def _kernel_bias(q_ref, mem_ref, bias_ref, wq_ref, bq_ref, wk_ref, bk_ref,
                 wv_ref, bv_ref, out_ref, qh_s, m_s, l_s, acc_s,
                 *, tk_valid, tk_pad, h_dtype):
    _attention_body(q_ref, mem_ref, bias_ref[...], wq_ref, bq_ref, wk_ref,
                    bk_ref, wv_ref, bv_ref, out_ref, qh_s, m_s, l_s, acc_s,
                    tk_valid=tk_valid, tk_pad=tk_pad, h_dtype=h_dtype)


def _kernel_nobias(q_ref, mem_ref, wq_ref, bq_ref, wk_ref, bk_ref,
                   wv_ref, bv_ref, out_ref, qh_s, m_s, l_s, acc_s,
                   *, tk_valid, tk_pad, h_dtype):
    _attention_body(q_ref, mem_ref, None, wq_ref, bq_ref, wk_ref, bk_ref,
                    wv_ref, bv_ref, out_ref, qh_s, m_s, l_s, acc_s,
                    tk_valid=tk_valid, tk_pad=tk_pad, h_dtype=h_dtype)


# ---------------------------------------------------------------------------
# tiling / VMEM policy
# ---------------------------------------------------------------------------
def _cdiv(a, b):
    return -(-a // b)


def _round_up(x, m):
    return _cdiv(x, m) * m


def _device_kind():
    try:
        return jax.devices()[0].device_kind.lower()
    except Exception:
        return ""


def _vmem_limit_for(kind, requested):
    if requested is not None:
        return requested
    if "v7" in kind:
        return 44 * MIB          # v7x: 64 MiB physical per TensorCore
    if "v5" in kind or "v6" in kind:
        return 96 * MIB          # v5e / v5p / v6e: 128 MiB physical
    return 40 * MIB              # conservative fallback


def _choose_tiles(B, Tk, K, Q, H_pad, itemsize, block_b_req, vmem_budget,
                  mem_buffers):
    """Pick (BLOCK_B, TKC, Tk_pad) honestly against the VMEM budget."""
    b_pad8 = _round_up(max(B, 1), 8)

    # Tk chunk: split into roughly-256-row chunks evenly (multiple of 8, minimal pad).
    tk_p8 = _round_up(Tk, 8)
    tkc = _round_up(_cdiv(tk_p8, _cdiv(tk_p8, 256)), 8)

    # Fixed (grid-invariant) VMEM: weights (assume double-buffered worst case),
    # small bias/wv vectors, slack for compiler temporaries.
    fixed = 2 * (Q + K) * H_pad * itemsize + 4 * (2 * H_pad + 2) * 4 + (64 << 10)

    def per_b(tkc_):
        return (mem_buffers * tkc_ * K * itemsize    # memory block (multi-buffered)
                + 2 * tkc_ * itemsize                # bias block
                + 2 * Q * itemsize                   # query block
                + 2 * K * 4                          # f32 output block
                + (K + H_pad + 2) * 4                # acc / qh / m / l scratch
                + 3 * tkc_ * H_pad * 4)              # kh / h / p temporaries (f32 worst case)

    # Shrink the Tk chunk until even the minimum 8-row batch block fits.
    while tkc > 8 and fixed + 8 * per_b(tkc) > vmem_budget:
        tkc = max(8, _round_up(tkc // 2, 8))
    n_kv = _cdiv(Tk, tkc)
    tk_pad = n_kv * tkc

    cap = max(8, ((vmem_budget - fixed) // max(per_b(tkc), 1)) // 8 * 8)
    bb = min(_round_up(max(block_b_req, 1), 8), cap, b_pad8)

    # Keep >= ~4 batch grid steps when the batch allows (feeds both v7x TCs and
    # keeps cross-step prefetch overlapped), but never shrink the streamed
    # memory block below ~1 MiB per step (DMA efficiency floor).
    step_bb = _round_up(_cdiv(b_pad8, 4), 8)
    dma_floor = _round_up(_cdiv(1 * MIB, max(tkc * K * itemsize, 1)), 8)
    bb = min(bb, max(step_bb, dma_floor, 8))
    bb = max(8, min(bb, cap, b_pad8))
    return bb, tkc, tk_pad


# ---------------------------------------------------------------------------
# wrapper
# ---------------------------------------------------------------------------
def attention_forward(query, bias, memory, params, *, block_b=256,
                      compute_dtype=jnp.bfloat16, vmem_limit_bytes=None):
    """query [B,1,Q], bias [B,1,1,Tk] or None, memory [B,Tk,K] -> [B,1,K] f32."""
    B, Tq, Q = query.shape
    assert Tq == 1, "kernel implements the single-query-step case (Tq == 1)"
    Bm, Tk, K = memory.shape
    assert Bm == B
    H = params["wq"].shape[1]

    kind = _device_kind()
    vmem_limit = _vmem_limit_for(kind, vmem_limit_bytes)
    vmem_budget = int(vmem_limit * 0.6)      # headroom for compiler scratch / spills

    itemsize = jnp.dtype(compute_dtype).itemsize
    # bf16 tanh / VPU math only where the VPU/EUP are bf16-native (v6e / v7x);
    # v5e and unknown parts keep f32 math (no bf16 VPU/EUP there).
    bf16_vpu = ("tpu" in kind) and not any(v in kind for v in ("v2", "v3", "v4", "v5"))
    h_dtype = compute_dtype if (bf16_vpu and compute_dtype == jnp.bfloat16) else jnp.float32

    H_pad = _round_up(H, 128)                # lane-align hidden dim (zero-padded weights)
    mem_buffers = 2 if "v7" in kind else 3   # 3rd mem buffer only on 128-MiB parts

    BLOCK_B, TKC, Tk_pad = _choose_tiles(B, Tk, K, Q, H_pad, itemsize, block_b,
                                         vmem_budget, mem_buffers)
    B_pad = _round_up(B, BLOCK_B)
    grid = (B_pad // BLOCK_B, Tk_pad // TKC)

    def pad_to(x, shape):
        pads = [(0, t - s) for s, t in zip(x.shape, shape)]
        return x if all(p == (0, 0) for p in pads) else jnp.pad(x, pads)

    # bf16 streamed activations; small bias vectors stay f32; weights bf16, H-padded.
    q2 = pad_to(query.reshape(B, Q).astype(compute_dtype), (B_pad, Q))
    mem = pad_to(memory.astype(compute_dtype), (B_pad, Tk_pad, K))

    wq = pad_to(params["wq"].astype(compute_dtype), (Q, H_pad))
    wk = pad_to(params["wk"].astype(compute_dtype), (K, H_pad))
    bq = pad_to(params["bq"].reshape(1, H).astype(jnp.float32), (1, H_pad))
    bk = pad_to(params["bk"].reshape(1, H).astype(jnp.float32), (1, H_pad))
    wv = pad_to(params["wv"].reshape(1, H).astype(jnp.float32), (1, H_pad))
    bv = params["bv"].reshape(1, 1).astype(jnp.float32)

    const2d = lambda i, j: (0, 0)

    def spec(shape, index_map, pm=None):
        if pm is None:
            return pl.BlockSpec(shape, index_map)
        return pl.BlockSpec(shape, index_map, pipeline_mode=pm)

    def run(use_pipeline_modes):
        # constant-index weights: single buffer (their block never changes);
        # memory stream: triple buffer on 128-MiB parts only.
        w_pm = pl.Buffered(1) if use_pipeline_modes else None
        mem_pm = (pl.Buffered(mem_buffers)
                  if (use_pipeline_modes and mem_buffers != 2) else None)

        weight_specs = [
            spec((Q, H_pad), const2d, w_pm),     # Wq
            spec((1, H_pad), const2d, w_pm),     # bq
            spec((K, H_pad), const2d, w_pm),     # Wk
            spec((1, H_pad), const2d, w_pm),     # bk
            spec((1, H_pad), const2d, w_pm),     # wv row
            spec((1, 1), const2d, w_pm),         # bv
        ]
        q_spec = pl.BlockSpec((BLOCK_B, Q), lambda i, j: (i, 0))
        mem_spec = spec((BLOCK_B, TKC, K), lambda i, j: (i, j, 0), mem_pm)
        out_spec = pl.BlockSpec((BLOCK_B, K), lambda i, j: (i, 0))

        scratch = [pltpu.VMEM((BLOCK_B, H_pad), jnp.float32),   # qh
                   pltpu.VMEM((BLOCK_B, 1), jnp.float32),       # running max
                   pltpu.VMEM((BLOCK_B, 1), jnp.float32),       # running denom
                   pltpu.VMEM((BLOCK_B, K), jnp.float32)]       # acc

        if bias is not None:
            bias_r = jnp.broadcast_to(bias, (B, 1, 1, Tk)).reshape(B, Tk)
            bias_r = pad_to(bias_r.astype(compute_dtype), (B_pad, Tk_pad))
            kernel = functools.partial(_kernel_bias, tk_valid=Tk, tk_pad=Tk_pad,
                                       h_dtype=h_dtype)
            in_specs = ([q_spec, mem_spec,
                         pl.BlockSpec((BLOCK_B, TKC), lambda i, j: (i, j))]
                        + weight_specs)
            args = (q2, mem, bias_r, wq, bq, wk, bk, wv, bv)
        else:
            kernel = functools.partial(_kernel_nobias, tk_valid=Tk, tk_pad=Tk_pad,
                                       h_dtype=h_dtype)
            in_specs = [q_spec, mem_spec] + weight_specs
            args = (q2, mem, wq, bq, wk, bk, wv, bv)

        return pl.pallas_call(
            kernel,
            out_shape=jax.ShapeDtypeStruct((B_pad, K), jnp.float32),
            grid_spec=pltpu.PrefetchScalarGridSpec(
                num_scalar_prefetch=0,
                grid=grid,
                in_specs=in_specs,
                out_specs=out_spec,
                scratch_shapes=scratch),
            compiler_params=pltpu.CompilerParams(
                dimension_semantics=("parallel", "arbitrary"),
                vmem_limit_bytes=vmem_limit),
        )(*args)

    try:
        out = run(True)
    except Exception:
        # pipeline_mode=pl.Buffered(...) not supported on this jax/Mosaic build
        # (or the bigger buffering did not fit) -- fall back to default buffering.
        out = run(False)

    return out[:B].reshape(B, 1, K)


# ---------------------------------------------------------------------------
# reference + params
# ---------------------------------------------------------------------------
def attention_ref(query, bias, memory, params):
    """Pure-JAX f32 reference mirroring the PyTorch forward exactly."""
    q = query.astype(jnp.float32) @ params["wq"] + params["bq"]     # [B, Tq, H]
    k = memory.astype(jnp.float32) @ params["wk"] + params["bk"]    # [B, Tk, H]
    logits = jnp.tanh(q + k) @ params["wv"] + params["bv"]          # [B, Tk, 1]
    logits = jnp.transpose(logits, (0, 2, 1))[:, :, None, :]        # [B, 1, 1, Tk]
    if bias is not None:
        logits = logits + bias
    weights = jax.nn.softmax(logits, axis=-1)
    weights = jnp.squeeze(weights, 2)                               # [B, 1, Tk]
    return jnp.matmul(weights, memory.astype(jnp.float32))          # [B, 1, K]


def _xavier_uniform(key, fan_in, fan_out):
    limit = math.sqrt(6.0 / (fan_in + fan_out))
    return jax.random.uniform(key, (fan_in, fan_out), jnp.float32, -limit, limit)


def init_params(key, q_size, k_size, hidden_size):
    kq, kk, kv = jax.random.split(key, 3)
    return {
        "wq": _xavier_uniform(kq, q_size, hidden_size),
        "bq": jnp.zeros((hidden_size,), jnp.float32),
        "wk": _xavier_uniform(kk, k_size, hidden_size),
        "bk": jnp.zeros((hidden_size,), jnp.float32),
        "wv": _xavier_uniform(kv, hidden_size, 1),
        "bv": jnp.zeros((1,), jnp.float32),
    }


if __name__ == "__main__":
    B, Tk = 2, 8
    q_size, k_size, hidden_size = 16, 32, 32

    key = jax.random.PRNGKey(0)
    kp, kq, km, kb = jax.random.split(key, 4)

    params = init_params(kp, q_size, k_size, hidden_size)
    query = jax.random.normal(kq, (B, 1, q_size), jnp.float32)
    memory = jax.random.normal(km, (B, Tk, k_size), jnp.float32)
    bias = 0.1 * jax.random.normal(kb, (B, 1, 1, Tk), jnp.float32)

    # with bias
    out = jax.block_until_ready(attention_forward(query, bias, memory, params))
    ref = attention_ref(query, bias, memory, params)
    assert out.shape == (B, 1, k_size)
    err = float(jnp.max(jnp.abs(out - ref)))
    # bf16 activations/weights (and approx reciprocal) vs f32 reference
    assert jnp.allclose(out, ref, rtol=3e-2, atol=3e-2), f"max abs err {err}"

    # without bias (separate kernel variant, no synthetic zero-bias DMA)
    out_nb = jax.block_until_ready(attention_forward(query, None, memory, params))
    ref_nb = attention_ref(query, None, memory, params)
    err_nb = float(jnp.max(jnp.abs(out_nb - ref_nb)))
    assert jnp.allclose(out_nb, ref_nb, rtol=3e-2, atol=3e-2), f"max abs err {err_nb}"

    print("KERNEL_OK")
</pallas_src>

<mosaic_0001>
module attributes {stable_mosaic.version = 11 : i64} {
  func.func @_kernel_bias(%arg0: i32, %arg1: i32, %arg2: memref<8x16xbf16, #tpu.memory_space<vmem>>, %arg3: memref<8x8x32xbf16, #tpu.memory_space<vmem>>, %arg4: memref<8x8xbf16, #tpu.memory_space<vmem>>, %arg5: memref<16x128xbf16, #tpu.memory_space<vmem>>, %arg6: memref<1x128xf32, #tpu.memory_space<vmem>>, %arg7: memref<32x128xbf16, #tpu.memory_space<vmem>>, %arg8: memref<1x128xf32, #tpu.memory_space<vmem>>, %arg9: memref<1x128xf32, #tpu.memory_space<vmem>>, %arg10: memref<1x1xf32, #tpu.memory_space<vmem>>, %arg11: memref<8x32xf32, #tpu.memory_space<vmem>>, %arg12: memref<8x128xf32, #tpu.memory_space<vmem>>, %arg13: memref<8x1xf32, #tpu.memory_space<vmem>>, %arg14: memref<8x1xf32, #tpu.memory_space<vmem>>, %arg15: memref<8x32xf32, #tpu.memory_space<vmem>>) attributes {dimension_semantics = [#tpu.dimension_semantics<parallel>, #tpu.dimension_semantics<arbitrary>], iteration_bounds = array<i64: 1, 1>, scalar_prefetch = 0 : i64, scratch_operands = 4 : i64, tpu.core_type = #tpu.core_type<tc>, window_params = [{transform_indices = @transform_0, window_bounds = array<i64: 8, 16>}, {transform_indices = @transform_1, window_bounds = array<i64: 8, 8, 32>}, {transform_indices = @transform_2, window_bounds = array<i64: 8, 8>}, {pipeline_mode = #tpu.pipeline_mode<synchronous>, transform_indices = @transform_3, window_bounds = array<i64: 16, 128>}, {pipeline_mode = #tpu.pipeline_mode<synchronous>, transform_indices = @transform_4, window_bounds = array<i64: 1, 128>}, {pipeline_mode = #tpu.pipeline_mode<synchronous>, transform_indices = @transform_5, window_bounds = array<i64: 32, 128>}, {pipeline_mode = #tpu.pipeline_mode<synchronous>, transform_indices = @transform_6, window_bounds = array<i64: 1, 128>}, {pipeline_mode = #tpu.pipeline_mode<synchronous>, transform_indices = @transform_7, window_bounds = array<i64: 1, 128>}, {pipeline_mode = #tpu.pipeline_mode<synchronous>, transform_indices = @transform_8, window_bounds = array<i64: 1, 1>}, {transform_indices = @transform_9, window_bounds = array<i64: 8, 32>}]} {
    %c0 = arith.constant 0 : index
    %c0_0 = arith.constant 0 : index
    %0 = vector.load %arg4[%c0, %c0_0] : memref<8x8xbf16, #tpu.memory_space<vmem>>, vector<8x8xbf16>
    %c0_i32 = arith.constant 0 : i32
    %1 = arith.cmpi eq, %arg1, %c0_i32 : i32
    %2 = arith.extui %1 : i1 to i32
    %c0_i32_1 = arith.constant 0 : i32
    %3 = arith.cmpi ne, %2, %c0_i32_1 : i32
    scf.if %3 {
      %c0_33 = arith.constant 0 : index
      %c0_34 = arith.constant 0 : index
      %55 = vector.load %arg2[%c0_33, %c0_34] : memref<8x16xbf16, #tpu.memory_space<vmem>>, vector<8x16xbf16>
      %c0_35 = arith.constant 0 : index
      %c0_36 = arith.constant 0 : index
      %56 = vector.load %arg5[%c0_35, %c0_36] : memref<16x128xbf16, #tpu.memory_space<vmem>>, vector<16x128xbf16>
      %cst_37 = arith.constant dense<0.000000e+00> : vector<8x128xf32>
      %57 = tpu.matmul %55, %56, %cst_37 {dimension_numbers = #tpu.dot_dimension_numbers<[1], [0], [0], [1], [0, 0, 1, 1], [], []>} : vector<8x16xbf16>, vector<16x128xbf16>, vector<8x128xf32> -> vector<8x128xf32>
      %c0_38 = arith.constant 0 : index
      %c0_39 = arith.constant 0 : index
      %58 = vector.load %arg6[%c0_38, %c0_39] : memref<1x128xf32, #tpu.memory_space<vmem>>, vector<1x128xf32>
      %59 = vector.broadcast %58 : vector<1x128xf32> to vector<8x128xf32>
      %60 = arith.addf %57, %59 : vector<8x128xf32>
      %c0_40 = arith.constant 0 : index
      %c0_41 = arith.constant 0 : index
      %61 = vector.load %arg12[%c0_40, %c0_41] : memref<8x128xf32, #tpu.memory_space<vmem>>, vector<8x128xf32>
      tpu.vector_store %arg12[%c0_40, %c0_41], %60 {strides = array<i32>} : memref<8x128xf32, #tpu.memory_space<vmem>>, vector<8x128xf32>,
      %cst_42 = arith.constant -1.000000e+30 : f32
      %62 = vector.broadcast %cst_42 : f32 to vector<8x1xf32>
      %c0_43 = arith.constant 0 : index
      %c0_44 = arith.constant 0 : index
      %63 = vector.load %arg13[%c0_43, %c0_44] : memref<8x1xf32, #tpu.memory_space<vmem>>, vector<8x1xf32>
      tpu.vector_store %arg13[%c0_43, %c0_44], %62 {strides = array<i32>} : memref<8x1xf32, #tpu.memory_space<vmem>>, vector<8x1xf32>,
      %cst_45 = arith.constant 0.000000e+00 : f32
      %64 = vector.broadcast %cst_45 : f32 to vector<8x1xf32>
      %c0_46 = arith.constant 0 : index
      %c0_47 = arith.constant 0 : index
      %65 = vector.load %arg14[%c0_46, %c0_47] : memref<8x1xf32, #tpu.memory_space<vmem>>, vector<8x1xf32>
      tpu.vector_store %arg14[%c0_46, %c0_47], %64 {strides = array<i32>} : memref<8x1xf32, #tpu.memory_space<vmem>>, vector<8x1xf32>,
      %cst_48 = arith.constant 0.000000e+00 : f32
      %66 = vector.broadcast %cst_48 : f32 to vector<8x32xf32>
      %c0_49 = arith.constant 0 : index
      %c0_50 = arith.constant 0 : index
      %67 = vector.load %arg15[%c0_49, %c0_50] : memref<8x32xf32, #tpu.memory_space<vmem>>, vector<8x32xf32>
      tpu.vector_store %arg15[%c0_49, %c0_50], %66 {strides = array<i32>} : memref<8x32xf32, #tpu.memory_space<vmem>>, vector<8x32xf32>,
    } else {
    }
    %c0_2 = arith.constant 0 : index
    %c0_3 = arith.constant 0 : index
    %c0_4 = arith.constant 0 : index
    %4 = vector.load %arg3[%c0_2, %c0_3, %c0_4] : memref<8x8x32xbf16, #tpu.memory_space<vmem>>, vector<8x8x32xbf16>
    %5 = vector.shape_cast %4 : vector<8x8x32xbf16> to vector<64x32xbf16>
    %c0_5 = arith.constant 0 : index
    %c0_6 = arith.constant 0 : index
    %6 = vector.load %arg7[%c0_5, %c0_6] : memref<32x128xbf16, #tpu.memory_space<vmem>>, vector<32x128xbf16>
    %cst = arith.constant dense<0.000000e+00> : vector<64x128xf32>
    %7 = tpu.matmul %5, %6, %cst {dimension_numbers = #tpu.dot_dimension_numbers<[1], [0], [0], [1], [0, 0, 1, 1], [], []>} : vector<64x32xbf16>, vector<32x128xbf16>, vector<64x128xf32> -> vector<64x128xf32>
    %c0_7 = arith.constant 0 : index
    %c0_8 = arith.constant 0 : index
    %8 = vector.load %arg8[%c0_7, %c0_8] : memref<1x128xf32, #tpu.memory_space<vmem>>, vector<1x128xf32>
    %9 = vector.broadcast %8 : vector<1x128xf32> to vector<64x128xf32>
    %10 = arith.addf %7, %9 : vector<64x128xf32>
    %11 = vector.shape_cast %10 : vector<64x128xf32> to vector<8x8x128xf32>
    %c0_9 = arith.constant 0 : index
    %c0_10 = arith.constant 0 : index
    %12 = vector.load %arg12[%c0_9, %c0_10] : memref<8x128xf32, #tpu.memory_space<vmem>>, vector<8x128xf32>
    %13 = vector.shape_cast %12 : vector<8x128xf32> to vector<8x1x128xf32>
    %14 = vector.broadcast %13 : vector<8x1x128xf32> to vector<8x8x128xf32>
    %15 = arith.addf %11, %14 : vector<8x8x128xf32>
    %16 = math.tanh %15 : vector<8x8x128xf32>
    %c0_11 = arith.constant 0 : index
    %c0_12 = arith.constant 0 : index
    %17 = vector.load %arg9[%c0_11, %c0_12] : memref<1x128xf32, #tpu.memory_space<vmem>>, vector<1x128xf32>
    %18 = vector.shape_cast %17 : vector<1x128xf32> to vector<1x1x128xf32>
    %19 = vector.broadcast %18 : vector<1x1x128xf32> to vector<8x8x128xf32>
    %20 = arith.mulf %16, %19 : vector<8x8x128xf32>
    %cst_13 = arith.constant dense<0.000000e+00> : vector<8x8xf32>
    %21 = vector.multi_reduction <add>, %20, %cst_13 [2] : vector<8x8x128xf32> to vector<8x8xf32>
    %c0_14 = arith.constant 0 : index
    %c0_15 = arith.constant 0 : index
    %22 = vector.load %arg10[%c0_14, %c0_15] : memref<1x1xf32, #tpu.memory_space<vmem>>, vector<1x1xf32>
    %23 = vector.broadcast %22 : vector<1x1xf32> to vector<8x8xf32>
    %24 = arith.addf %21, %23 : vector<8x8xf32>
    %25 = arith.extf %0 : vector<8x8xbf16> to vector<8x8xf32>
    %26 = arith.addf %24, %25 : vector<8x8xf32>
    %c0_16 = arith.constant 0 : index
    %c0_17 = arith.constant 0 : index
    %27 = vector.load %arg13[%c0_16, %c0_17] : memref<8x1xf32, #tpu.memory_space<vmem>>, vector<8x1xf32>
    %cst_18 = arith.constant dense<0xFF800000> : vector<8xf32>
    %28 = vector.multi_reduction <maximumf>, %26, %cst_18 [1] : vector<8x8xf32> to vector<8xf32>
    %29 = vector.shape_cast %28 : vector<8xf32> to vector<8x1xf32>
    %30 = arith.maximumf %27, %29 : vector<8x1xf32>
    %31 = arith.subf %27, %30 : vector<8x1xf32>
    %32 = math.exp %31 : vector<8x1xf32>
    %33 = vector.broadcast %30 : vector<8x1xf32> to vector<8x8xf32>
    %34 = arith.subf %26, %33 : vector<8x8xf32>
    %35 = math.exp %34 : vector<8x8xf32>
    %c0_19 = arith.constant 0 : index
    %c0_20 = arith.constant 0 : index
    %36 = vector.load %arg14[%c0_19, %c0_20] : memref<8x1xf32, #tpu.memory_space<vmem>>, vector<8x1xf32>
    %37 = arith.mulf %32, %36 : vector<8x1xf32>
    %cst_21 = arith.constant dense<0.000000e+00> : vector<8xf32>
    %38 = vector.multi_reduction <add>, %35, %cst_21 [1] : vector<8x8xf32> to vector<8xf32>
    %39 = vector.shape_cast %38 : vector<8xf32> to vector<8x1xf32>
    %40 = arith.addf %37, %39 : vector<8x1xf32>
    %c0_22 = arith.constant 0 : index
    %c0_23 = arith.constant 0 : index
    %41 = vector.load %arg14[%c0_22, %c0_23] : memref<8x1xf32, #tpu.memory_space<vmem>>, vector<8x1xf32>
    tpu.vector_store %arg14[%c0_22, %c0_23], %40 {strides = array<i32>} : memref<8x1xf32, #tpu.memory_space<vmem>>, vector<8x1xf32>,
    %42 = arith.truncf %35 : vector<8x8xf32> to vector<8x8xbf16>
    %43 = vector.shape_cast %42 : vector<8x8xbf16> to vector<8x1x8xbf16>
    "tpu.trace_start"() <{level = 10 : i32, message = "bqt,btk->bqk"}> : () -> ()
    %cst_24 = arith.constant dense<0.000000e+00> : vector<8x1x32xf32>
    %44 = tpu.matmul %43, %4, %cst_24 {dimension_numbers = #tpu.dot_dimension_numbers<[2], [1], [1], [2], [0, 0, 0, 1, 1, 2], [0], [0]>} : vector<8x1x8xbf16>, vector<8x8x32xbf16>, vector<8x1x32xf32> -> vector<8x1x32xf32>
    "tpu.trace_stop"() : () -> ()
    %45 = vector.shape_cast %44 : vector<8x1x32xf32> to vector<8x32xf32>
    %c0_25 = arith.constant 0 : index
    %c0_26 = arith.constant 0 : index
    %46 = vector.load %arg15[%c0_25, %c0_26] : memref<8x32xf32, #tpu.memory_space<vmem>>, vector<8x32xf32>
    %47 = vector.broadcast %32 : vector<8x1xf32> to vector<8x32xf32>
    %48 = arith.mulf %47, %46 : vector<8x32xf32>
    %49 = arith.addf %48, %45 : vector<8x32xf32>
    %c0_27 = arith.constant 0 : index
    %c0_28 = arith.constant 0 : index
    %50 = vector.load %arg15[%c0_27, %c0_28] : memref<8x32xf32, #tpu.memory_space<vmem>>, vector<8x32xf32>
    tpu.vector_store %arg15[%c0_27, %c0_28], %49 {strides = array<i32>} : memref<8x32xf32, #tpu.memory_space<vmem>>, vector<8x32xf32>,
    %c0_29 = arith.constant 0 : index
    %c0_30 = arith.constant 0 : index
    %51 = vector.load %arg13[%c0_29, %c0_30] : memref<8x1xf32, #tpu.memory_space<vmem>>, vector<8x1xf32>
    tpu.vector_store %arg13[%c0_29, %c0_30], %30 {strides = array<i32>} : memref<8x1xf32, #tpu.memory_space<vmem>>, vector<8x1xf32>,
    %c0_i32_31 = arith.constant 0 : i32
    %52 = arith.cmpi eq, %arg1, %c0_i32_31 : i32
    %53 = arith.extui %52 : i1 to i32
    %c0_i32_32 = arith.constant 0 : i32
    %54 = arith.cmpi ne, %53, %c0_i32_32 : i32
    scf.if %54 {
      %c0_33 = arith.constant 0 : index
      %c0_34 = arith.constant 0 : index
      %55 = vector.load %arg15[%c0_33, %c0_34] : memref<8x32xf32, #tpu.memory_space<vmem>>, vector<8x32xf32>
      %c0_35 = arith.constant 0 : index
      %c0_36 = arith.constant 0 : index
      %56 = vector.load %arg14[%c0_35, %c0_36] : memref<8x1xf32, #tpu.memory_space<vmem>>, vector<8x1xf32>
      %57 = tpu.reciprocal %56 {approx = true} : vector<8x1xf32> -> vector<8x1xf32>
      %58 = vector.broadcast %57 : vector<8x1xf32> to vector<8x32xf32>
      %59 = arith.mulf %55, %58 : vector<8x32xf32>
      %c0_37 = arith.constant 0 : index
      %c0_38 = arith.constant 0 : index
      %60 = vector.load %arg11[%c0_37, %c0_38] : memref<8x32xf32, #tpu.memory_space<vmem>>, vector<8x32xf32>
      tpu.vector_store %arg11[%c0_37, %c0_38], %59 {strides = array<i32>} : memref<8x32xf32, #tpu.memory_space<vmem>>, vector<8x32xf32>,
    } else {
    }
    return
  }
  func.func @transform_0(%arg0: i32, %arg1: i32) -> (i32, i32) {
    %c0_i32 = arith.constant 0 : i32
    %c0_i32_0 = arith.constant 0 : i32
    return %arg0, %c0_i32 : i32, i32
  }
  func.func @transform_1(%arg0: i32, %arg1: i32) -> (i32, i32, i32) {
    %c0_i32 = arith.constant 0 : i32
    %c0_i32_0 = arith.constant 0 : i32
    return %arg0, %arg1, %c0_i32 : i32, i32, i32
  }
  func.func @transform_2(%arg0: i32, %arg1: i32) -> (i32, i32) {
    %c0_i32 = arith.constant 0 : i32
    return %arg0, %arg1 : i32, i32
  }
  func.func @transform_3(%arg0: i32, %arg1: i32) -> (i32, i32) {
    %c0_i32 = arith.constant 0 : i32
    %c0_i32_0 = arith.constant 0 : i32
    %c0_i32_1 = arith.constant 0 : i32
    return %c0_i32, %c0_i32_0 : i32, i32
  }
  func.func @transform_4(%arg0: i32, %arg1: i32) -> (i32, i32) {
    %c0_i32 = arith.constant 0 : i32
    %c0_i32_0 = arith.constant 0 : i32
    %c0_i32_1 = arith.constant 0 : i32
    return %c0_i32, %c0_i32_0 : i32, i32
  }
  func.func @transform_5(%arg0: i32, %arg1: i32) -> (i32, i32) {
    %c0_i32 = arith.constant 0 : i32
    %c0_i32_0 = arith.constant 0 : i32
    %c0_i32_1 = arith.constant 0 : i32
    return %c0_i32, %c0_i32_0 : i32, i32
  }
  func.func @transform_6(%arg0: i32, %arg1: i32) -> (i32, i32) {
    %c0_i32 = arith.constant 0 : i32
    %c0_i32_0 = arith.constant 0 : i32
    %c0_i32_1 = arith.constant 0 : i32
    return %c0_i32, %c0_i32_0 : i32, i32
  }
  func.func @transform_7(%arg0: i32, %arg1: i32) -> (i32, i32) {
    %c0_i32 = arith.constant 0 : i32
    %c0_i32_0 = arith.constant 0 : i32
    %c0_i32_1 = arith.constant 0 : i32
    return %c0_i32, %c0_i32_0 : i32, i32
  }
  func.func @transform_8(%arg0: i32, %arg1: i32) -> (i32, i32) {
    %c0_i32 = arith.constant 0 : i32
    %c0_i32_0 = arith.constant 0 : i32
    %c0_i32_1 = arith.constant 0 : i32
    return %c0_i32, %c0_i32_0 : i32, i32
  }
  func.func @transform_9(%arg0: i32, %arg1: i32) -> (i32, i32) {
    %c0_i32 = arith.constant 0 : i32
    %c0_i32_0 = arith.constant 0 : i32
    return %arg0, %c0_i32 : i32, i32
  }
}

</mosaic_0001>

<llo_original>
// kernel: tpu_custom_call.1
$region0: #{tpu_custom_call.1}
  #allocation0 [shape = 'u32[]', space=smem, size = 0x4, offset = 0x4, fixed_abs, tag = 'smem constant byte address 0x4 - core index']
  #allocation1 [shape = 'u32[144,128]{1,0:T(1,128)}', space=vmem, size = 0x12000, scoped, tag = 'internal scratch']
  #allocation2 [shape = 'f32[8,128]{1,0:T(8,128)}', space=vmem, size = 0x1000, scoped, tag = 'scratch operand']
  #allocation3 [shape = 'f32[8,1]{1,0:T(8,128)}', space=vmem, size = 0x1000, scoped, tag = 'scratch operand']
  #allocation4 [shape = 'f32[8,1]{1,0:T(8,128)}', space=vmem, size = 0x1000, scoped, tag = 'scratch operand']
  #allocation5 [shape = 'f32[8,32]{1,0:T(8,128)}', space=vmem, size = 0x1000, scoped, tag = 'scratch operand']
  #allocation6 [shape = 'f32[1,1]{1,0:T(1,128)S(1)}', space=vmem, size = 0x200, scoped, tag = 'scoped memory for tpu_custom_call.1']
  %s0 = inlined_call_operand.hbm [shape: bf16[8,16], index: 0, kind: input, shape index: {}]
  %s1 = inlined_call_operand.hbm [shape: bf16[8,8,32], index: 1, kind: input, shape index: {}]
  %s2 = inlined_call_operand.vmem [shape: bf16[8,8], index: 2, kind: input, shape index: {}]
  %s3 = inlined_call_operand.hbm [shape: bf16[16,128], index: 3, kind: input, shape index: {}]
  %s4 = inlined_call_operand.vmem [shape: f32[1,128], index: 4, kind: input, shape index: {}]
  %s5 = inlined_call_operand.vmem [shape: bf16[32,128], index: 5, kind: input, shape index: {}]
  %s6 = inlined_call_operand.vmem [shape: f32[1,128], index: 6, kind: input, shape index: {}]
  %s7 = inlined_call_operand.vmem [shape: f32[1,128], index: 7, kind: input, shape index: {}]
  %s8 = inlined_call_operand.<no memory space> [shape: f32[1,1], index: 8, kind: input, shape index: {}]
  %s9 = inlined_call_operand.hbm [shape: f32[8,32], index: 9, kind: output, shape index: {}]
  %s10 = sld [smem:[#allocation0]]
  $region66: #{tpu_custom_call.1} parent=0
    _
  %s12 = ssub.s32 1, %s10
  %s13 = scalar_select 0, %s12, %s10
  %v14 = vstv %s8
  %15 = vst [vmem:[#allocation6] sm:$0x1] %v14
  $region1: #{tpu_custom_call.1} parent=0
    #allocation7 [shape = 'u8[2048]{0}', space=vmem, size = 0x800, scoped, tag = 'input window, operand 0, single buffered']
    #allocation8 [shape = 's32[1]{0}', space=sflag, size = 0x4, scoped, tag = 'scoped memory for tpu_custom_call.1']
    #allocation9 [shape = 's32[1]{0}', space=sflag, size = 0x4, scoped, tag = 'scoped memory for tpu_custom_call.1']
    #allocation10 [shape = 'u8[16384]{0}', space=vmem, size = 0x4000, scoped, tag = 'input window, operand 1, single buffered']
    #allocation11 [shape = 's32[1]{0}', space=sflag, size = 0x4, scoped, tag = 'scoped memory for tpu_custom_call.1']
    #allocation12 [shape = 'u8[4096]{0}', space=vmem, size = 0x1000, scoped, tag = 'input window, operand 3, single buffered']
    #allocation13 [shape = 'u8[4096]{0}', space=vmem, size = 0x1000, scoped, tag = 'output window, operand 0, single buffered']
    %16 = vsyncpa [#allocation8], 0
    %17 = vsyncpa [#allocation11], 0
    %18 = vsyncpa [#allocation9], 0
    // Predicated region
    $region2: #{tpu_custom_call.1} parent=1 // pred_check
      _
    $region3: #{tpu_custom_call.1} parent=1 // pred_check_branch
      %20 = sbr.rel (0) target = $region5
    $region4: #{tpu_custom_call.1} parent=1 // pred_region
      %s22 = ssub.s32 64, 64
      %23 = vsyncadd [#allocation8], %s22
      %s25 = sshll.u32 [#allocation7], 4
      %s26 = int_to_ptr.vmem [resolvable:$true] %s25
      %28 = dma.hbm_to_vmem [thread:$0]  %s0, 64, %s26, [#allocation8]
    $region5: #{tpu_custom_call.1} parent=1 // pred_fallthru
      _
    // Predicated region
    $region6: #{tpu_custom_call.1} parent=1 // pred_check
      _
    $region7: #{tpu_custom_call.1} parent=1 // pred_check_branch
      %30 = sbr.rel (0) target = $region9
    $region8: #{tpu_custom_call.1} parent=1 // pred_region
      %s32 = ssub.s32 512, 512
      %33 = vsyncadd [#allocation11], %s32
      %s34 = sshll.u32 [#allocation10], 4
      %s35 = int_to_ptr.vmem [resolvable:$true] %s34
      %40 = dma.hbm_to_vmem [thread:$0]  %s1, 512, %s35, [#allocation11], 64, 64, 4
    $region9: #{tpu_custom_call.1} parent=1 // pred_fallthru
      _
    // Predicated region
    $region10: #{tpu_custom_call.1} parent=1 // pred_check
      _
    $region11: #{tpu_custom_call.1} parent=1 // pred_check_branch
      %42 = sbr.rel (0) target = $region13
    $region12: #{tpu_custom_call.1} parent=1 // pred_region
      _
    $region13: #{tpu_custom_call.1} parent=1 // pred_fallthru
      _
    // Predicated region
    $region14: #{tpu_custom_call.1} parent=1 // pred_check
      _
    $region15: #{tpu_custom_call.1} parent=1 // pred_check_branch
      %44 = sbr.rel (0) target = $region17
    $region16: #{tpu_custom_call.1} parent=1 // pred_region
      %s46 = ssub.s32 128, 128
      %47 = vsyncadd [#allocation11], %s46
      %s48 = sshll.u32 [#allocation12], 4
      %s49 = int_to_ptr.vmem [resolvable:$true] %s48
      %54 = dma.hbm_to_vmem [thread:$0]  %s3, 128, %s49, [#allocation11], 64, 64, 4
    $region17: #{tpu_custom_call.1} parent=1 // pred_fallthru
      _
    // Predicated region
    $region18: #{tpu_custom_call.1} parent=1 // pred_check
      _
    $region19: #{tpu_custom_call.1} parent=1 // pred_check_branch
      %56 = sbr.rel (0) target = $region21
    $region20: #{tpu_custom_call.1} parent=1 // pred_region
      _
    $region21: #{tpu_custom_call.1} parent=1 // pred_fallthru
      _
    // Predicated region
    $region22: #{tpu_custom_call.1} parent=1 // pred_check
      _
    $region23: #{tpu_custom_call.1} parent=1 // pred_check_branch
      %58 = sbr.rel (0) target = $region25
    $region24: #{tpu_custom_call.1} parent=1 // pred_region
      _
    $region25: #{tpu_custom_call.1} parent=1 // pred_fallthru
      _
    // Predicated region
    $region26: #{tpu_custom_call.1} parent=1 // pred_check
      _
    $region27: #{tpu_custom_call.1} parent=1 // pred_check_branch
      %60 = sbr.rel (0) target = $region29
    $region28: #{tpu_custom_call.1} parent=1 // pred_region
      _
    $region29: #{tpu_custom_call.1} parent=1 // pred_fallthru
      _
    // Predicated region
    $region30: #{tpu_custom_call.1} parent=1 // pred_check
      _
    $region31: #{tpu_custom_call.1} parent=1 // pred_check_branch
      %62 = sbr.rel (0) target = $region33
    $region32: #{tpu_custom_call.1} parent=1 // pred_region
      _
    $region33: #{tpu_custom_call.1} parent=1 // pred_fallthru
      _
    // Predicated region
    $region34: #{tpu_custom_call.1} parent=1 // pred_check
      _
    $region35: #{tpu_custom_call.1} parent=1 // pred_check_branch
      %64 = sbr.rel (0) target = $region37
    $region36: #{tpu_custom_call.1} parent=1 // pred_region
      _
    $region37: #{tpu_custom_call.1} parent=1 // pred_fallthru
      _
    // Predicated region
    $region38: #{tpu_custom_call.1} parent=1 // pred_check
      _
    $region39: #{tpu_custom_call.1} parent=1 // pred_check_branch
      %66 = sbr.rel (0) target = $region41
    $region40: #{tpu_custom_call.1} parent=1 // pred_region
      %67 = dma.done [#allocation8], 64
    $region41: #{tpu_custom_call.1} parent=1 // pred_fallthru
      _
    // Predicated region
    $region42: #{tpu_custom_call.1} parent=1 // pred_check
      _
    $region43: #{tpu_custom_call.1} parent=1 // pred_check_branch
      %69 = sbr.rel (0) target = $region45
    $region44: #{tpu_custom_call.1} parent=1 // pred_region
      %70 = dma.done [#allocation11], 512
    $region45: #{tpu_custom_call.1} parent=1 // pred_fallthru
      _
    // Predicated region
    $region46: #{tpu_custom_call.1} parent=1 // pred_check
      _
    $region47: #{tpu_custom_call.1} parent=1 // pred_check_branch
      %72 = sbr.rel (0) target = $region49
    $region48: #{tpu_custom_call.1} parent=1 // pred_region
      %73 = dma.done [#allocation11], 128
    $region49: #{tpu_custom_call.1} parent=1 // pred_fallthru
      _
    %v75 = vld [vmem:[%s2] sm:$0xf]
    %p76 = scmp.eq.s32.totalorder 0, 0
    // Predicated region
    $region50: #{tpu_custom_call.1} parent=1 // pred_check
      %p77 = pneg %p76
    $region51: #{tpu_custom_call.1} parent=1 // pred_check_branch
      %79 = sbr.rel (%p77) target = $region53
    $region52: #{tpu_custom_call.1} parent=1 // pred_region
      %v80 = vld [vmem:[#allocation7] sm:$0xf]
      %v81 = vld [vmem:[#allocation12] sm:$0xf]
      %v82 = vld [vmem:[#allocation12 + $0x4] sm:$0xf]
      %v83 = vld [vmem:[%s4] sm:$0x1]
      %v85 = vlaneseq
      %v86 = vshrl.u32 %v85, 7
      %v87 = vsub.s32 0, %v86
      %v88 = vrot.slane %v83, %v87
      %v92 = vunpack.c.l.b16 %v81
      %v93 = vunpack.c.l.b16 %v82
      %v94 = vpack.c.b16 %v93, %v92
      %vm96 = vcmask 130048
      %v98 = vsel %vm96, %v80, 0
      %100 = vmatprep.subr.bf16.mxu0 0
      %101 = vmatpush1.bf16.msra.mxu0 %v94
      %102 = vmatprep.subr.bf16.mxu0 0
      %103 = vmatpush1.bf16.msra.mxu0 0
      %104 = vmatprep.subr.bf16.mxu0 0
      %105 = vmatpush1.bf16.msra.mxu0 0
      %106 = vmatprep.subr.bf16.mxu0 0
      %107 = vmatpush1.bf16.msra.mxu0 0
      %108 = vmatprep.subr.bf16.mxu0 0
      %109 = vmatpush1.bf16.msra.mxu0 0
      %110 = vmatprep.subr.bf16.mxu0 0
      %111 = vmatpush1.bf16.msra.mxu0 0
      %112 = vmatprep.subr.bf16.mxu0 0
      %113 = vmatpush1.bf16.msra.mxu0 0
      %114 = vmatprep.subr.bf16.mxu0 0
      %115 = vmatpush1.bf16.msra.mxu0 0
      %116 = vmatprep.subr.bf16.mxu0 0
      %117 = vmatpush1.bf16.msra.mxu0 0
      %118 = vmatprep.subr.bf16.mxu0 0
      %119 = vmatpush1.bf16.msra.mxu0 0
      %120 = vmatprep.subr.bf16.mxu0 0
      %121 = vmatpush1.bf16.msra.mxu0 0
      %122 = vmatprep.subr.bf16.mxu0 0
      %123 = vmatpush1.bf16.msra.mxu0 0
      %124 = vmatprep.subr.bf16.mxu0 0
      %125 = vmatpush1.bf16.msra.mxu0 0
      %126 = vmatprep.subr.bf16.mxu0 0
      %127 = vmatpush1.bf16.msra.mxu0 0
      %128 = vmatprep.subr.bf16.mxu0 0
      %129 = vmatpush1.bf16.msra.mxu0 0
      %130 = vmatprep.subr.bf16.mxu0 0
      %131 = vmatpush1.bf16.msra.mxu0 0
      %132 = vmatprep.mubr.bf16.mxu0 0
      %133 = vmatmul.mubr.bf16.gmra.mrb[0].mxu0 %v98
      %v134 = vpop.f32.mrb[0].mxu0
      %v135 = vadd.f32 %v88, %v134
      %v136 = vpop.f32.mrb[0].mxu0
      %v137 = vpop.f32.mrb[0].mxu0
      %v138 = vpop.f32.mrb[0].mxu0
      %139 = vdwg.mxu0
      %140 = vst [vmem:[#allocation2] sm:$0xff] %v135
      %vm141 = vcmask 7168
      %142 = vst.msk [vmem:[#allocation3] sm:$0xff] %vm141, -1e+30
      %143 = vst.msk [vmem:[#allocation4] sm:$0xff] %vm141, 0.0
      %vm144 = vcmask 261120
      %145 = vst.msk [vmem:[#allocation5] sm:$0xff] %vm144, 0.0
    $region53: #{tpu_custom_call.1} parent=1 // pred_fallthru
      _
    %v146 = vld [vmem:[#allocation10] sm:$0xf]
    %v147 = vld [vmem:[#allocation10 + $0x4] sm:$0xf]
    %v148 = vld [vmem:[#allocation10 + $0x8] sm:$0xf]
    %v149 = vld [vmem:[#allocation10 + $0xc] sm:$0xf]
    %v150 = vld [vmem:[#allocation10 + $0x10] sm:$0xf]
    %v151 = vld [vmem:[#allocation10 + $0x14] sm:$0xf]
    %v152 = vld [vmem:[#allocation10 + $0x18] sm:$0xf]
    %v153 = vld [vmem:[#allocation10 + $0x1c] sm:$0xf]
    %v154 = vld [vmem:[%s5] sm:$0xf]
    %v155 = vld [vmem:[%s5 + $0x4] sm:$0xf]
    %v156 = vld [vmem:[%s5 + $0x8] sm:$0xf]
    %v157 = vld [vmem:[%s5 + $0xc] sm:$0xf]
    %v158 = vld [vmem:[%s6] sm:$0x1]
    %v160 = vlaneseq
    %v161 = vshrl.u32 %v160, 7
    %v162 = vsub.s32 0, %v161
    %v163 = vrot.slane %v158, %v162
    %v173 = vunpack.c.l.b16 %v146
    %v174 = vunpack.c.l.b16 %v147
    %v175 = vunpack.c.l.b16 %v148
    %v176 = vunpack.c.l.b16 %v149
    %v177 = vunpack.c.l.b16 %v150
    %v178 = vunpack.c.l.b16 %v151
    %v179 = vunpack.c.l.b16 %v152
    %v180 = vunpack.c.l.b16 %v153
    %v181 = vpack.c.b16 %v174, %v173
    %v182 = vpack.c.b16 %v176, %v175
    %v183 = vpack.c.b16 %v178, %v177
    %v184 = vpack.c.b16 %v180, %v179
    %v189 = vunpack.c.l.b16 %v154
    %v190 = vunpack.c.l.b16 %v155
    %v191 = vunpack.c.l.b16 %v156
    %v192 = vunpack.c.l.b16 %v157
    %v193 = vpack.c.b16 %v190, %v189
    %v194 = vpack.c.b16 %v192, %v191
    %vm197 = vcmask 261120
    %v199 = vsel %vm197, %v181, 0
    %v202 = vsel %vm197, %v182, 0
    %v205 = vsel %vm197, %v183, 0
    %v208 = vsel %vm197, %v184, 0
    %210 = vmatprep.subr.bf16.mxu0 0
    %211 = vmatpush1.bf16.msra.mxu0 %v193
    %212 = vmatprep.subr.bf16.mxu0 0
    %213 = vmatpush1.bf16.msra.mxu0 %v194
    %214 = vmatprep.subr.bf16.mxu0 0
    %215 = vmatpush1.bf16.msra.mxu0 0
    %216 = vmatprep.subr.bf16.mxu0 0
    %217 = vmatpush1.bf16.msra.mxu0 0
    %218 = vmatprep.subr.bf16.mxu0 0
    %219 = vmatpush1.bf16.msra.mxu0 0
    %220 = vmatprep.subr.bf16.mxu0 0
    %221 = vmatpush1.bf16.msra.mxu0 0
    %222 = vmatprep.subr.bf16.mxu0 0
    %223 = vmatpush1.bf16.msra.mxu0 0
    %224 = vmatprep.subr.bf16.mxu0 0
    %225 = vmatpush1.bf16.msra.mxu0 0
    %226 = vmatprep.subr.bf16.mxu0 0
    %227 = vmatpush1.bf16.msra.mxu0 0
    %228 = vmatprep.subr.bf16.mxu0 0
    %229 = vmatpush1.bf16.msra.mxu0 0
    %230 = vmatprep.subr.bf16.mxu0 0
    %231 = vmatpush1.bf16.msra.mxu0 0
    %232 = vmatprep.subr.bf16.mxu0 0
    %233 = vmatpush1.bf16.msra.mxu0 0
    %234 = vmatprep.subr.bf16.mxu0 0
    %235 = vmatpush1.bf16.msra.mxu0 0
    %236 = vmatprep.subr.bf16.mxu0 0
    %237 = vmatpush1.bf16.msra.mxu0 0
    %238 = vmatprep.subr.bf16.mxu0 0
    %239 = vmatpush1.bf16.msra.mxu0 0
    %240 = vmatprep.subr.bf16.mxu0 0
    %241 = vmatpush1.bf16.msra.mxu0 0
    %242 = vmatprep.mubr.bf16.mxu0 0
    %243 = vmatmul.mubr.bf16.gmra.mrb[0].mxu0 %v199
    %v244 = vpop.f32.mrb[0].mxu0
    %v245 = vadd.f32 %v163, %v244
    %v246 = vpop.f32.mrb[0].mxu0
    %v247 = vpop.f32.mrb[0].mxu0
    %v248 = vadd.f32 %v163, %v247
    %v249 = vpop.f32.mrb[0].mxu0
    %250 = vmatprep.mubr.bf16.mxu0 0
    %251 = vmatmul.mubr.bf16.gmra.mrb[0].mxu0 %v202
    %v252 = vpop.f32.mrb[0].mxu0
    %v253 = vadd.f32 %v163, %v252
    %v254 = vpop.f32.mrb[0].mxu0
    %v255 = vpop.f32.mrb[0].mxu0
    %v256 = vadd.f32 %v163, %v255
    %v257 = vpop.f32.mrb[0].mxu0
    %258 = vmatprep.mubr.bf16.mxu0 0
    %259 = vmatmul.mubr.bf16.gmra.mrb[0].mxu0 %v205
    %v260 = vpop.f32.mrb[0].mxu0
    %v261 = vadd.f32 %v163, %v260
    %v262 = vpop.f32.mrb[0].mxu0
    %v263 = vpop.f32.mrb[0].mxu0
    %v264 = vadd.f32 %v163, %v263
    %v265 = vpop.f32.mrb[0].mxu0
    %266 = vmatprep.mubr.bf16.mxu0 0
    %267 = vmatmul.mubr.bf16.gmra.mrb[0].mxu0 %v208
    %v268 = vpop.f32.mrb[0].mxu0
    %v269 = vadd.f32 %v163, %v268
    %v270 = vpop.f32.mrb[0].mxu0
    %v271 = vpop.f32.mrb[0].mxu0
    %v272 = vadd.f32 %v163, %v271
    %v273 = vpop.f32.mrb[0].mxu0
    %274 = vdwg.mxu0
    %v275 = vld [vmem:[#allocation2] sm:$0xff]
    %v277 = vcombine.high %v275, %v275
    %v279 = vunpack.c.l.s4 1966171168
    %v280 = vunpack.c.0.s8 %v279
    %v281 = vlaneseq
    %v282 = vshrl.u32 %v281, 7
    %v283 = vsub.s32 %v280, %v282
    %v284 = vrot.slane %v275, %v283
    %v286 = vunpack.c.l.s4 1966171168
    %v287 = vunpack.c.0.s8 %v286
    %v288 = vlaneseq
    %v289 = vshrl.u32 %v288, 7
    %v290 = vsub.s32 %v287, %v289
    %v291 = vrot.slane %v277, %v290
    %v292 = vcombine.high %v284, %v284
    %v293 = vcombine.high %v291, %v291
    %v295 = vunpack.c.l.s4 1966171168
    %v296 = vunpack.c.0.s8 %v295
    %v297 = vlaneseq
    %v298 = vshrl.u32 %v297, 7
    %v299 = vsub.s32 %v296, %v298
    %v300 = vrot.slane %v284, %v299
    %v302 = vunpack.c.l.s4 1966171168
    %v303 = vunpack.c.0.s8 %v302
    %v304 = vlaneseq
    %v305 = vshrl.u32 %v304, 7
    %v306 = vsub.s32 %v303, %v305
    %v307 = vrot.slane %v291, %v306
    %v309 = vunpack.c.l.s4 1966171168
    %v310 = vunpack.c.0.s8 %v309
    %v311 = vlaneseq
    %v312 = vshrl.u32 %v311, 7
    %v313 = vsub.s32 %v310, %v312
    %v314 = vrot.slane %v292, %v313
    %v316 = vunpack.c.l.s4 1966171168
    %v317 = vunpack.c.0.s8 %v316
    %v318 = vlaneseq
    %v319 = vshrl.u32 %v318, 7
    %v320 = vsub.s32 %v317, %v319
    %v321 = vrot.slane %v293, %v320
    %v322 = vcombine.high %v300, %v300
    %v323 = vcombine.high %v307, %v307
    %v324 = vcombine.high %v314, %v314
    %v325 = vcombine.high %v321, %v321
    %v326 = vlaneseq
    %v327 = vshrl.u32 %v326, 7
    %v328 = vsub.s32 0, %v327
    %v329 = vrot.slane %v300, %v328
    %v330 = vlaneseq
    %v331 = vshrl.u32 %v330, 7
    %v332 = vsub.s32 0, %v331
    %v333 = vrot.slane %v314, %v332
    %v334 = vlaneseq
    %v335 = vshrl.u32 %v334, 7
    %v336 = vsub.s32 0, %v335
    %v337 = vrot.slane %v322, %v336
    %v338 = vlaneseq
    %v339 = vshrl.u32 %v338, 7
    %v340 = vsub.s32 0, %v339
    %v341 = vrot.slane %v324, %v340
    %v342 = vlaneseq
    %v343 = vshrl.u32 %v342, 7
    %v344 = vsub.s32 0, %v343
    %v345 = vrot.slane %v307, %v344
    %v346 = vlaneseq
    %v347 = vshrl.u32 %v346, 7
    %v348 = vsub.s32 0, %v347
    %v349 = vrot.slane %v321, %v348
    %v350 = vlaneseq
    %v351 = vshrl.u32 %v350, 7
    %v352 = vsub.s32 0, %v351
    %v353 = vrot.slane %v323, %v352
    %v354 = vlaneseq
    %v355 = vshrl.u32 %v354, 7
    %v356 = vsub.s32 0, %v355
    %v357 = vrot.slane %v325, %v356
    %v366 = vadd.f32 %v245, %v329
    %v367 = vadd.f32 %v248, %v333
    %v368 = vadd.f32 %v253, %v337
    %v369 = vadd.f32 %v256, %v341
    %v370 = vadd.f32 %v261, %v345
    %v371 = vadd.f32 %v264, %v349
    %v372 = vadd.f32 %v269, %v353
    %v373 = vadd.f32 %v272, %v357
    %v374 = vtanh.pop %v366
    %v375 = vtanh.pop %v367
    %v376 = vtanh.pop %v368
    %v377 = vtanh.pop %v369
    %v378 = vtanh.pop %v370
    %v379 = vtanh.pop %v371
    %v380 = vtanh.pop %v372
    %v381 = vtanh.pop %v373
    %v382 = vld [vmem:[%s7] sm:$0x1]
    %v384 = vlaneseq
    %v385 = vshrl.u32 %v384, 7
    %v386 = vsub.s32 0, %v385
    %v387 = vrot.slane %v382, %v386
    %v389 = vmul.f32 %v374, %v387
    %v390 = vmul.f32 %v375, %v387
    %v391 = vmul.f32 %v376, %v387
    %v392 = vmul.f32 %v377, %v387
    %v393 = vmul.f32 %v378, %v387
    %v394 = vmul.f32 %v379, %v387
    %v395 = vmul.f32 %v380, %v387
    %v396 = vmul.f32 %v381, %v387
    %397 = vadd.xlane.f32.xlu0 %v389
    %v398 = vpop.xlane.xlu0 %397
    %399 = vadd.xlane.f32.xlu0 %v390
    %v400 = vpop.xlane.xlu0 %399
    %401 = vadd.xlane.f32.xlu0 %v391
    %v402 = vpop.xlane.xlu0 %401
    %403 = vadd.xlane.f32.xlu0 %v392
    %v404 = vpop.xlane.xlu0 %403
    %405 = vadd.xlane.f32.xlu0 %v393
    %v406 = vpop.xlane.xlu0 %405
    %407 = vadd.xlane.f32.xlu0 %v394
    %v408 = vpop.xlane.xlu0 %407
    %409 = vadd.xlane.f32.xlu0 %v395
    %v410 = vpop.xlane.xlu0 %409
    %411 = vadd.xlane.f32.xlu0 %v396
    %v412 = vpop.xlane.xlu0 %411
    %v413 = vld [vmem:[#allocation6] sm:$0x1]
    %v415 = vlaneseq
    %v416 = vshrl.u32 %v415, 7
    %v417 = vsub.s32 0, %v416
    %v418 = vrot.slane %v413, %v417
    %419 = vset.pattern.permute.xlu0 0
    %420 = vperm.xlu0 %419, %v418
    %v421 = vpop.permute.xlu0 %420
    %v423 = vadd.f32 %v398, %v421
    %v424 = vadd.f32 %v400, %v421
    %v425 = vadd.f32 %v402, %v421
    %v426 = vadd.f32 %v404, %v421
    %v427 = vadd.f32 %v406, %v421
    %v428 = vadd.f32 %v408, %v421
    %v429 = vadd.f32 %v410, %v421
    %v430 = vadd.f32 %v412, %v421
    %v431 = vunpack.c.l.bf16 %v75
    %v433 = vlaneseq
    %v434 = vshrl.u32 %v433, 7
    %v435 = vsub.s32 0, %v434
    %v436 = vrot.slane %v431, %v435
    %438 = vbcast.lane.b32.xlu0 %v436, 256
    %v439 = vpop.permute.xlu0 %438
    %v440 = vlaneseq
    %v441 = vshrl.u32 %v440, 7
    %v442 = vsub.s32 1, %v441
    %v443 = vrot.slane %v431, %v442
    %445 = vbcast.lane.b32.xlu0 %v443, 256
    %v446 = vpop.permute.xlu0 %445
    %v447 = vlaneseq
    %v448 = vshrl.u32 %v447, 7
    %v449 = vsub.s32 2, %v448
    %v450 = vrot.slane %v431, %v449
    %452 = vbcast.lane.b32.xlu0 %v450, 256
    %v453 = vpop.permute.xlu0 %452
    %v454 = vlaneseq
    %v455 = vshrl.u32 %v454, 7
    %v456 = vsub.s32 3, %v455
    %v457 = vrot.slane %v431, %v456
    %459 = vbcast.lane.b32.xlu0 %v457, 256
    %v460 = vpop.permute.xlu0 %459
    %v461 = vlaneseq
    %v462 = vshrl.u32 %v461, 7
    %v463 = vsub.s32 4, %v462
    %v464 = vrot.slane %v431, %v463
    %466 = vbcast.lane.b32.xlu0 %v464, 256
    %v467 = vpop.permute.xlu0 %466
    %v468 = vlaneseq
    %v469 = vshrl.u32 %v468, 7
    %v470 = vsub.s32 5, %v469
    %v471 = vrot.slane %v431, %v470
    %473 = vbcast.lane.b32.xlu0 %v471, 256
    %v474 = vpop.permute.xlu0 %473
    %v475 = vlaneseq
    %v476 = vshrl.u32 %v475, 7
    %v477 = vsub.s32 6, %v476
    %v478 = vrot.slane %v431, %v477
    %480 = vbcast.lane.b32.xlu0 %v478, 256
    %v481 = vpop.permute.xlu0 %480
    %v482 = vlaneseq
    %v483 = vshrl.u32 %v482, 7
    %v484 = vsub.s32 7, %v483
    %v485 = vrot.slane %v431, %v484
    %487 = vbcast.lane.b32.xlu0 %v485, 256
    %v488 = vpop.permute.xlu0 %487
    %v497 = vadd.f32 %v423, %v439
    %v498 = vadd.f32 %v424, %v446
    %v499 = vadd.f32 %v425, %v453
    %v500 = vadd.f32 %v426, %v460
    %v501 = vadd.f32 %v427, %v467
    %v502 = vadd.f32 %v428, %v474
    %v503 = vadd.f32 %v429, %v481
    %v504 = vadd.f32 %v430, %v488
    %v505 = vld [vmem:[#allocation3] sm:$0xff]
    %514 = vset.pattern.permute.xlu0 0
    %515 = vperm.xlu0 %514, %v497
    %v516 = vpop.permute.xlu0 %515
    %517 = vset.pattern.permute.xlu0 0
    %518 = vperm.xlu0 %517, %v498
    %v519 = vpop.permute.xlu0 %518
    %520 = vset.pattern.permute.xlu0 0
    %521 = vperm.xlu0 %520, %v499
    %v522 = vpop.permute.xlu0 %521
    %523 = vset.pattern.permute.xlu0 0
    %524 = vperm.xlu0 %523, %v500
    %v525 = vpop.permute.xlu0 %524
    %526 = vset.pattern.permute.xlu0 0
    %527 = vperm.xlu0 %526, %v501
    %v528 = vpop.permute.xlu0 %527
    %529 = vset.pattern.permute.xlu0 0
    %530 = vperm.xlu0 %529, %v502
    %v531 = vpop.permute.xlu0 %530
    %532 = vset.pattern.permute.xlu0 0
    %533 = vperm.xlu0 %532, %v503
    %v534 = vpop.permute.xlu0 %533
    %535 = vset.pattern.permute.xlu0 0
    %536 = vperm.xlu0 %535, %v504
    %v537 = vpop.permute.xlu0 %536
    %v538 = vlaneseq
    %v539 = vand.u32 %v538, 127
    %v540 = vlaneseq
    %v541 = vshrl.u32 %v540, 7
    %v542 = vsub.s32 %v539, %v541
    %v543 = vrot.slane %v516, %v542
    %v544 = vlaneseq
    %v545 = vshrl.u32 %v544, 7
    %v546 = vsub.s32 %v539, %v545
    %v547 = vrot.slane %v519, %v546
    %v548 = vlaneseq
    %v549 = vshrl.u32 %v548, 7
    %v550 = vsub.s32 %v539, %v549
    %v551 = vrot.slane %v522, %v550
    %v552 = vlaneseq
    %v553 = vshrl.u32 %v552, 7
    %v554 = vsub.s32 %v539, %v553
    %v555 = vrot.slane %v525, %v554
    %v556 = vlaneseq
    %v557 = vshrl.u32 %v556, 7
    %v558 = vsub.s32 %v539, %v557
    %v559 = vrot.slane %v528, %v558
    %v560 = vlaneseq
    %v561 = vshrl.u32 %v560, 7
    %v562 = vsub.s32 %v539, %v561
    %v563 = vrot.slane %v531, %v562
    %v564 = vlaneseq
    %v565 = vshrl.u32 %v564, 7
    %v566 = vsub.s32 %v539, %v565
    %v567 = vrot.slane %v534, %v566
    %v568 = vlaneseq
    %v569 = vshrl.u32 %v568, 7
    %v570 = vsub.s32 %v539, %v569
    %v571 = vrot.slane %v537, %v570
    %vm572 = vcmask 1041409
    %v573 = vsel %vm572, %v547, %v543
    %vm574 = vcmask 1042434
    %v575 = vsel %vm574, %v551, %v573
    %vm576 = vcmask 1043459
    %v577 = vsel %vm576, %v555, %v575
    %vm578 = vcmask 1044484
    %v579 = vsel %vm578, %v559, %v577
    %vm580 = vcmask 1045509
    %v581 = vsel %vm580, %v563, %v579
    %vm582 = vcmask 1046534
    %v583 = vsel %vm582, %v567, %v581
    %vm584 = vcmask 1047559
    %v585 = vsel %vm584, %v571, %v583
    %vm587 = vcmask 64512
    %v588 = vsel %vm587, %v585, -inf
    %589 = vmax.xlane.f32.xlu0 %v588
    %v590 = vpop.xlane.xlu0 %589
    %v591 = vmax.f32 %v505, %v590
    %v592 = vsub.f32 %v505, %v591
    %v593 = vmul.f32 %v592, 1.442695
    %v594 = vpow.pop %v593
    %596 = vset.pattern.permute.xlu0 0
    %597 = vperm.xlu0 %596, %v591
    %v598 = vpop.permute.xlu0 %597
    %v599 = vlaneseq
    %v600 = vshrl.u32 %v599, 7
    %v601 = vsub.s32 0, %v600
    %v602 = vrot.slane %v598, %v601
    %v603 = vlaneseq
    %v604 = vshrl.u32 %v603, 7
    %v605 = vsub.s32 1, %v604
    %v606 = vrot.slane %v598, %v605
    %v607 = vlaneseq
    %v608 = vshrl.u32 %v607, 7
    %v609 = vsub.s32 2, %v608
    %v610 = vrot.slane %v598, %v609
    %v611 = vlaneseq
    %v612 = vshrl.u32 %v611, 7
    %v613 = vsub.s32 3, %v612
    %v614 = vrot.slane %v598, %v613
    %v615 = vlaneseq
    %v616 = vshrl.u32 %v615, 7
    %v617 = vsub.s32 4, %v616
    %v618 = vrot.slane %v598, %v617
    %v619 = vlaneseq
    %v620 = vshrl.u32 %v619, 7
    %v621 = vsub.s32 5, %v620
    %v622 = vrot.slane %v598, %v621
    %v623 = vlaneseq
    %v624 = vshrl.u32 %v623, 7
    %v625 = vsub.s32 6, %v624
    %v626 = vrot.slane %v598, %v625
    %v627 = vlaneseq
    %v628 = vshrl.u32 %v627, 7
    %v629 = vsub.s32 7, %v628
    %v630 = vrot.slane %v598, %v629
    %v639 = vsub.f32 %v497, %v602
    %v640 = vsub.f32 %v498, %v606
    %v641 = vsub.f32 %v499, %v610
    %v642 = vsub.f32 %v500, %v614
    %v643 = vsub.f32 %v501, %v618
    %v644 = vsub.f32 %v502, %v622
    %v645 = vsub.f32 %v503, %v626
    %v646 = vsub.f32 %v504, %v630
    %v647 = vmul.f32 %v639, 1.442695
    %v648 = vpow.pop %v647
    %v649 = vmul.f32 %v640, 1.442695
    %v650 = vpow.pop %v649
    %v651 = vmul.f32 %v641, 1.442695
    %v652 = vpow.pop %v651
    %v653 = vmul.f32 %v642, 1.442695
    %v654 = vpow.pop %v653
    %v655 = vmul.f32 %v643, 1.442695
    %v656 = vpow.pop %v655
    %v657 = vmul.f32 %v644, 1.442695
    %v658 = vpow.pop %v657
    %v659 = vmul.f32 %v645, 1.442695
    %v660 = vpow.pop %v659
    %v661 = vmul.f32 %v646, 1.442695
    %v662 = vpow.pop %v661
    %v663 = vld [vmem:[#allocation4] sm:$0xff]
    %v664 = vmul.f32 %v594, %v663
    %673 = vset.pattern.permute.xlu0 0
    %674 = vperm.xlu0 %673, %v648
    %v675 = vpop.permute.xlu0 %674
    %676 = vset.pattern.permute.xlu0 0
    %677 = vperm.xlu0 %676, %v650
    %v678 = vpop.permute.xlu0 %677
    %679 = vset.pattern.permute.xlu0 0
    %680 = vperm.xlu0 %679, %v652
    %v681 = vpop.permute.xlu0 %680
    %682 = vset.pattern.permute.xlu0 0
    %683 = vperm.xlu0 %682, %v654
    %v684 = vpop.permute.xlu0 %683
    %685 = vset.pattern.permute.xlu0 0
    %686 = vperm.xlu0 %685, %v656
    %v687 = vpop.permute.xlu0 %686
    %688 = vset.pattern.permute.xlu0 0
    %689 = vperm.xlu0 %688, %v658
    %v690 = vpop.permute.xlu0 %689
    %691 = vset.pattern.permute.xlu0 0
    %692 = vperm.xlu0 %691, %v660
    %v693 = vpop.permute.xlu0 %692
    %694 = vset.pattern.permute.xlu0 0
    %695 = vperm.xlu0 %694, %v662
    %v696 = vpop.permute.xlu0 %695
    %v697 = vlaneseq
    %v698 = vshrl.u32 %v697, 7
    %v699 = vsub.s32 %v539, %v698
    %v700 = vrot.slane %v675, %v699
    %v701 = vlaneseq
    %v702 = vshrl.u32 %v701, 7
    %v703 = vsub.s32 %v539, %v702
    %v704 = vrot.slane %v678, %v703
    %v705 = vlaneseq
    %v706 = vshrl.u32 %v705, 7
    %v707 = vsub.s32 %v539, %v706
    %v708 = vrot.slane %v681, %v707
    %v709 = vlaneseq
    %v710 = vshrl.u32 %v709, 7
    %v711 = vsub.s32 %v539, %v710
    %v712 = vrot.slane %v684, %v711
    %v713 = vlaneseq
    %v714 = vshrl.u32 %v713, 7
    %v715 = vsub.s32 %v539, %v714
    %v716 = vrot.slane %v687, %v715
    %v717 = vlaneseq
    %v718 = vshrl.u32 %v717, 7
    %v719 = vsub.s32 %v539, %v718
    %v720 = vrot.slane %v690, %v719
    %v721 = vlaneseq
    %v722 = vshrl.u32 %v721, 7
    %v723 = vsub.s32 %v539, %v722
    %v724 = vrot.slane %v693, %v723
    %v725 = vlaneseq
    %v726 = vshrl.u32 %v725, 7
    %v727 = vsub.s32 %v539, %v726
    %v728 = vrot.slane %v696, %v727
    %v729 = vsel %vm572, %v704, %v700
    %v730 = vsel %vm574, %v708, %v729
    %v731 = vsel %vm576, %v712, %v730
    %v732 = vsel %vm578, %v716, %v731
    %v733 = vsel %vm580, %v720, %v732
    %v734 = vsel %vm582, %v724, %v733
    %v735 = vsel %vm584, %v728, %v734
    %v737 = vsel %vm587, %v735, 0.0
    %738 = vadd.xlane.f32.xlu0 %v737
    %v739 = vpop.xlane.xlu0 %738
    %v740 = vadd.f32 %v664, %v739
    %vm741 = vcmask 7168
    %742 = vst.msk [vmem:[#allocation4] sm:$0xff] %vm741, %v740
    %v743 = vpack.c.bf16 %v648, %v648
    %v744 = vpack.c.bf16 %v650, %v650
    %v745 = vpack.c.bf16 %v652, %v652
    %v746 = vpack.c.bf16 %v654, %v654
    %v747 = vpack.c.bf16 %v656, %v656
    %v748 = vpack.c.bf16 %v658, %v658
    %v749 = vpack.c.bf16 %v660, %v660
    %v750 = vpack.c.bf16 %v662, %v662
    %v752 = vunpack.c.l.b16 %v743
    %753 = vset.pattern.permute.xlu0 0
    %754 = vperm.xlu0 %753, %v752
    %v755 = vpop.permute.xlu0 %754
    %v756 = vlaneseq
    %v757 = vshrl.u32 %v756, 7
    %v758 = vsub.s32 %v539, %v757
    %v759 = vrot.slane %v755, %v758
    %v760 = vpack.c.b16 %v759, %v759
    %v762 = vsel %vm587, %v760, 0
    %vm764 = vcmask 1043456
    %v766 = vsel %vm764, %v146, 0
    %768 = vmatprep.subr.bf16.mxu0 0
    %769 = vmatpush1.bf16.msra.mxu0 %v766
    %770 = vmatprep.subr.bf16.mxu0 0
    %771 = vmatpush1.bf16.msra.mxu0 0
    %772 = vmatprep.subr.bf16.mxu0 0
    %773 = vmatpush1.bf16.msra.mxu0 0
    %774 = vmatprep.subr.bf16.mxu0 0
    %775 = vmatpush1.bf16.msra.mxu0 0
    %776 = vmatprep.subr.bf16.mxu0 0
    %777 = vmatpush1.bf16.msra.mxu0 0
    %778 = vmatprep.subr.bf16.mxu0 0
    %779 = vmatpush1.bf16.msra.mxu0 0
    %780 = vmatprep.subr.bf16.mxu0 0
    %781 = vmatpush1.bf16.msra.mxu0 0
    %782 = vmatprep.subr.bf16.mxu0 0
    %783 = vmatpush1.bf16.msra.mxu0 0
    %784 = vmatprep.subr.bf16.mxu0 0
    %785 = vmatpush1.bf16.msra.mxu0 0
    %786 = vmatprep.subr.bf16.mxu0 0
    %787 = vmatpush1.bf16.msra.mxu0 0
    %788 = vmatprep.subr.bf16.mxu0 0
    %789 = vmatpush1.bf16.msra.mxu0 0
    %790 = vmatprep.subr.bf16.mxu0 0
    %791 = vmatpush1.bf16.msra.mxu0 0
    %792 = vmatprep.subr.bf16.mxu0 0
    %793 = vmatpush1.bf16.msra.mxu0 0
    %794 = vmatprep.subr.bf16.mxu0 0
    %795 = vmatpush1.bf16.msra.mxu0 0
    %796 = vmatprep.subr.bf16.mxu0 0
    %797 = vmatpush1.bf16.msra.mxu0 0
    %798 = vmatprep.subr.bf16.mxu0 0
    %799 = vmatpush1.bf16.msra.mxu0 0
    %800 = vmatprep.mubr.bf16.mxu0 0
    %801 = vmatmul.mubr.bf16.gmra.mrb[0].mxu0 %v762
    %v802 = vpop.f32.mrb[0].mxu0
    %v803 = vadd.f32 0.0, %v802
    %v804 = vpop.f32.mrb[0].mxu0
    %v805 = vpop.f32.mrb[0].mxu0
    %v806 = vpop.f32.mrb[0].mxu0
    %807 = vdwg.mxu0
    %v809 = vunpack.c.l.b16 %v744
    %810 = vset.pattern.permute.xlu0 0
    %811 = vperm.xlu0 %810, %v809
    %v812 = vpop.permute.xlu0 %811
    %v813 = vlaneseq
    %v814 = vshrl.u32 %v813, 7
    %v815 = vsub.s32 %v539, %v814
    %v816 = vrot.slane %v812, %v815
    %v817 = vpack.c.b16 %v816, %v816
    %v819 = vsel %vm587, %v817, 0
    %v822 = vsel %vm764, %v147, 0
    %824 = vmatprep.subr.bf16.mxu0 0
    %825 = vmatpush1.bf16.msra.mxu0 %v822
    %826 = vmatprep.subr.bf16.mxu0 0
    %827 = vmatpush1.bf16.msra.mxu0 0
    %828 = vmatprep.subr.bf16.mxu0 0
    %829 = vmatpush1.bf16.msra.mxu0 0
    %830 = vmatprep.subr.bf16.mxu0 0
    %831 = vmatpush1.bf16.msra.mxu0 0
    %832 = vmatprep.subr.bf16.mxu0 0
    %833 = vmatpush1.bf16.msra.mxu0 0
    %834 = vmatprep.subr.bf16.mxu0 0
    %835 = vmatpush1.bf16.msra.mxu0 0
    %836 = vmatprep.subr.bf16.mxu0 0
    %837 = vmatpush1.bf16.msra.mxu0 0
    %838 = vmatprep.subr.bf16.mxu0 0
    %839 = vmatpush1.bf16.msra.mxu0 0
    %840 = vmatprep.subr.bf16.mxu0 0
    %841 = vmatpush1.bf16.msra.mxu0 0
    %842 = vmatprep.subr.bf16.mxu0 0
    %843 = vmatpush1.bf16.msra.mxu0 0
    %844 = vmatprep.subr.bf16.mxu0 0
    %845 = vmatpush1.bf16.msra.mxu0 0
    %846 = vmatprep.subr.bf16.mxu0 0
    %847 = vmatpush1.bf16.msra.mxu0 0
    %848 = vmatprep.subr.bf16.mxu0 0
    %849 = vmatpush1.bf16.msra.mxu0 0
    %850 = vmatprep.subr.bf16.mxu0 0
    %851 = vmatpush1.bf16.msra.mxu0 0
    %852 = vmatprep.subr.bf16.mxu0 0
    %853 = vmatpush1.bf16.msra.mxu0 0
    %854 = vmatprep.subr.bf16.mxu0 0
    %855 = vmatpush1.bf16.msra.mxu0 0
    %856 = vmatprep.mubr.bf16.mxu0 0
    %857 = vmatmul.mubr.bf16.gmra.mrb[0].mxu0 %v819
    %v858 = vpop.f32.mrb[0].mxu0
    %v859 = vadd.f32 0.0, %v858
    %v860 = vpop.f32.mrb[0].mxu0
    %v861 = vpop.f32.mrb[0].mxu0
    %v862 = vpop.f32.mrb[0].mxu0
    %863 = vdwg.mxu0
    %v865 = vunpack.c.l.b16 %v745
    %866 = vset.pattern.permute.xlu0 0
    %867 = vperm.xlu0 %866, %v865
    %v868 = vpop.permute.xlu0 %867
    %v869 = vlaneseq
    %v870 = vshrl.u32 %v869, 7
    %v871 = vsub.s32 %v539, %v870
    %v872 = vrot.slane %v868, %v871
    %v873 = vpack.c.b16 %v872, %v872
    %v875 = vsel %vm587, %v873, 0
    %v878 = vsel %vm764, %v148, 0
    %880 = vmatprep.subr.bf16.mxu0 0
    %881 = vmatpush1.bf16.msra.mxu0 %v878
    %882 = vmatprep.subr.bf16.mxu0 0
    %883 = vmatpush1.bf16.msra.mxu0 0
    %884 = vmatprep.subr.bf16.mxu0 0
    %885 = vmatpush1.bf16.msra.mxu0 0
    %886 = vmatprep.subr.bf16.mxu0 0
    %887 = vmatpush1.bf16.msra.mxu0 0
    %888 = vmatprep.subr.bf16.mxu0 0
    %889 = vmatpush1.bf16.msra.mxu0 0
    %890 = vmatprep.subr.bf16.mxu0 0
    %891 = vmatpush1.bf16.msra.mxu0 0
    %892 = vmatprep.subr.bf16.mxu0 0
    %893 = vmatpush1.bf16.msra.mxu0 0
    %894 = vmatprep.subr.bf16.mxu0 0
    %895 = vmatpush1.bf16.msra.mxu0 0
    %896 = vmatprep.subr.bf16.mxu0 0
    %897 = vmatpush1.bf16.msra.mxu0 0
    %898 = vmatprep.subr.bf16.mxu0 0
    %899 = vmatpush1.bf16.msra.mxu0 0
    %900 = vmatprep.subr.bf16.mxu0 0
    %901 = vmatpush1.bf16.msra.mxu0 0
    %902 = vmatprep.subr.bf16.mxu0 0
    %903 = vmatpush1.bf16.msra.mxu0 0
    %904 = vmatprep.subr.bf16.mxu0 0
    %905 = vmatpush1.bf16.msra.mxu0 0
    %906 = vmatprep.subr.bf16.mxu0 0
    %907 = vmatpush1.bf16.msra.mxu0 0
    %908 = vmatprep.subr.bf16.mxu0 0
    %909 = vmatpush1.bf16.msra.mxu0 0
    %910 = vmatprep.subr.bf16.mxu0 0
    %911 = vmatpush1.bf16.msra.mxu0 0
    %912 = vmatprep.mubr.bf16.mxu0 0
    %913 = vmatmul.mubr.bf16.gmra.mrb[0].mxu0 %v875
    %v914 = vpop.f32.mrb[0].mxu0
    %v915 = vadd.f32 0.0, %v914
    %v916 = vpop.f32.mrb[0].mxu0
    %v917 = vpop.f32.mrb[0].mxu0
    %v918 = vpop.f32.mrb[0].mxu0
    %919 = vdwg.mxu0
    %v921 = vunpack.c.l.b16 %v746
    %922 = vset.pattern.permute.xlu0 0
    %923 = vperm.xlu0 %922, %v921
    %v924 = vpop.permute.xlu0 %923
    %v925 = vlaneseq
    %v926 = vshrl.u32 %v925, 7
    %v927 = vsub.s32 %v539, %v926
    %v928 = vrot.slane %v924, %v927
    %v929 = vpack.c.b16 %v928, %v928
    %v931 = vsel %vm587, %v929, 0
    %v934 = vsel %vm764, %v149, 0
    %936 = vmatprep.subr.bf16.mxu0 0
    %937 = vmatpush1.bf16.msra.mxu0 %v934
    %938 = vmatprep.subr.bf16.mxu0 0
    %939 = vmatpush1.bf16.msra.mxu0 0
    %940 = vmatprep.subr.bf16.mxu0 0
    %941 = vmatpush1.bf16.msra.mxu0 0
    %942 = vmatprep.subr.bf16.mxu0 0
    %943 = vmatpush1.bf16.msra.mxu0 0
    %944 = vmatprep.subr.bf16.mxu0 0
    %945 = vmatpush1.bf16.msra.mxu0 0
    %946 = vmatprep.subr.bf16.mxu0 0
    %947 = vmatpush1.bf16.msra.mxu0 0
    %948 = vmatprep.subr.bf16.mxu0 0
    %949 = vmatpush1.bf16.msra.mxu0 0
    %950 = vmatprep.subr.bf16.mxu0 0
    %951 = vmatpush1.bf16.msra.mxu0 0
    %952 = vmatprep.subr.bf16.mxu0 0
    %953 = vmatpush1.bf16.msra.mxu0 0
    %954 = vmatprep.subr.bf16.mxu0 0
    %955 = vmatpush1.bf16.msra.mxu0 0
    %956 = vmatprep.subr.bf16.mxu0 0
    %957 = vmatpush1.bf16.msra.mxu0 0
    %958 = vmatprep.subr.bf16.mxu0 0
    %959 = vmatpush1.bf16.msra.mxu0 0
    %960 = vmatprep.subr.bf16.mxu0 0
    %961 = vmatpush1.bf16.msra.mxu0 0
    %962 = vmatprep.subr.bf16.mxu0 0
    %963 = vmatpush1.bf16.msra.mxu0 0
    %964 = vmatprep.subr.bf16.mxu0 0
    %965 = vmatpush1.bf16.msra.mxu0 0
    %966 = vmatprep.subr.bf16.mxu0 0
    %967 = vmatpush1.bf16.msra.mxu0 0
    %968 = vmatprep.mubr.bf16.mxu0 0
    %969 = vmatmul.mubr.bf16.gmra.mrb[0].mxu0 %v931
    %v970 = vpop.f32.mrb[0].mxu0
    %v971 = vadd.f32 0.0, %v970
    %v972 = vpop.f32.mrb[0].mxu0
    %v973 = vpop.f32.mrb[0].mxu0
    %v974 = vpop.f32.mrb[0].mxu0
    %975 = vdwg.mxu0
    %v977 = vunpack.c.l.b16 %v747
    %978 = vset.pattern.permute.xlu0 0
    %979 = vperm.xlu0 %978, %v977
    %v980 = vpop.permute.xlu0 %979
    %v981 = vlaneseq
    %v982 = vshrl.u32 %v981, 7
    %v983 = vsub.s32 %v539, %v982
    %v984 = vrot.slane %v980, %v983
    %v985 = vpack.c.b16 %v984, %v984
    %v987 = vsel %vm587, %v985, 0
    %v990 = vsel %vm764, %v150, 0
    %992 = vmatprep.subr.bf16.mxu0 0
    %993 = vmatpush1.bf16.msra.mxu0 %v990
    %994 = vmatprep.subr.bf16.mxu0 0
    %995 = vmatpush1.bf16.msra.mxu0 0
    %996 = vmatprep.subr.bf16.mxu0 0
    %997 = vmatpush1.bf16.msra.mxu0 0
    %998 = vmatprep.subr.bf16.mxu0 0
    %999 = vmatpush1.bf16.msra.mxu0 0
    %1000 = vmatprep.subr.bf16.mxu0 0
    %1001 = vmatpush1.bf16.msra.mxu0 0
    %1002 = vmatprep.subr.bf16.mxu0 0
    %1003 = vmatpush1.bf16.msra.mxu0 0
    %1004 = vmatprep.subr.bf16.mxu0 0
    %1005 = vmatpush1.bf16.msra.mxu0 0
    %1006 = vmatprep.subr.bf16.mxu0 0
    %1007 = vmatpush1.bf16.msra.mxu0 0
    %1008 = vmatprep.subr.bf16.mxu0 0
    %1009 = vmatpush1.bf16.msra.mxu0 0
    %1010 = vmatprep.subr.bf16.mxu0 0
    %1011 = vmatpush1.bf16.msra.mxu0 0
    %1012 = vmatprep.subr.bf16.mxu0 0
    %1013 = vmatpush1.bf16.msra.mxu0 0
    %1014 = vmatprep.subr.bf16.mxu0 0
    %1015 = vmatpush1.bf16.msra.mxu0 0
    %1016 = vmatprep.subr.bf16.mxu0 0
    %1017 = vmatpush1.bf16.msra.mxu0 0
    %1018 = vmatprep.subr.bf16.mxu0 0
    %1019 = vmatpush1.bf16.msra.mxu0 0
    %1020 = vmatprep.subr.bf16.mxu0 0
    %1021 = vmatpush1.bf16.msra.mxu0 0
    %1022 = vmatprep.subr.bf16.mxu0 0
    %1023 = vmatpush1.bf16.msra.mxu0 0
    %1024 = vmatprep.mubr.bf16.mxu0 0
    %1025 = vmatmul.mubr.bf16.gmra.mrb[0].mxu0 %v987
    %v1026 = vpop.f32.mrb[0].mxu0
    %v1027 = vadd.f32 0.0, %v1026
    %v1028 = vpop.f32.mrb[0].mxu0
    %v1029 = vpop.f32.mrb[0].mxu0
    %v1030 = vpop.f32.mrb[0].mxu0
    %1031 = vdwg.mxu0
    %v1033 = vunpack.c.l.b16 %v748
    %1034 = vset.pattern.permute.xlu0 0
    %1035 = vperm.xlu0 %1034, %v1033
    %v1036 = vpop.permute.xlu0 %1035
    %v1037 = vlaneseq
    %v1038 = vshrl.u32 %v1037, 7
    %v1039 = vsub.s32 %v539, %v1038
    %v1040 = vrot.slane %v1036, %v1039
    %v1041 = vpack.c.b16 %v1040, %v1040
    %v1043 = vsel %vm587, %v1041, 0
    %v1046 = vsel %vm764, %v151, 0
    %1048 = vmatprep.subr.bf16.mxu0 0
    %1049 = vmatpush1.bf16.msra.mxu0 %v1046
    %1050 = vmatprep.subr.bf16.mxu0 0
    %1051 = vmatpush1.bf16.msra.mxu0 0
    %1052 = vmatprep.subr.bf16.mxu0 0
    %1053 = vmatpush1.bf16.msra.mxu0 0
    %1054 = vmatprep.subr.bf16.mxu0 0
    %1055 = vmatpush1.bf16.msra.mxu0 0
    %1056 = vmatprep.subr.bf16.mxu0 0
    %1057 = vmatpush1.bf16.msra.mxu0 0
    %1058 = vmatprep.subr.bf16.mxu0 0
    %1059 = vmatpush1.bf16.msra.mxu0 0
    %1060 = vmatprep.subr.bf16.mxu0 0
    %1061 = vmatpush1.bf16.msra.mxu0 0
    %1062 = vmatprep.subr.bf16.mxu0 0
    %1063 = vmatpush1.bf16.msra.mxu0 0
    %1064 = vmatprep.subr.bf16.mxu0 0
    %1065 = vmatpush1.bf16.msra.mxu0 0
    %1066 = vmatprep.subr.bf16.mxu0 0
    %1067 = vmatpush1.bf16.msra.mxu0 0
    %1068 = vmatprep.subr.bf16.mxu0 0
    %1069 = vmatpush1.bf16.msra.mxu0 0
    %1070 = vmatprep.subr.bf16.mxu0 0
    %1071 = vmatpush1.bf16.msra.mxu0 0
    %1072 = vmatprep.subr.bf16.mxu0 0
    %1073 = vmatpush1.bf16.msra.mxu0 0
    %1074 = vmatprep.subr.bf16.mxu0 0
    %1075 = vmatpush1.bf16.msra.mxu0 0
    %1076 = vmatprep.subr.bf16.mxu0 0
    %1077 = vmatpush1.bf16.msra.mxu0 0
    %1078 = vmatprep.subr.bf16.mxu0 0
    %1079 = vmatpush1.bf16.msra.mxu0 0
    %1080 = vmatprep.mubr.bf16.mxu0 0
    %1081 = vmatmul.mubr.bf16.gmra.mrb[0].mxu0 %v1043
    %v1082 = vpop.f32.mrb[0].mxu0
    %v1083 = vadd.f32 0.0, %v1082
    %v1084 = vpop.f32.mrb[0].mxu0
    %v1085 = vpop.f32.mrb[0].mxu0
    %v1086 = vpop.f32.mrb[0].mxu0
    %1087 = vdwg.mxu0
    %v1089 = vunpack.c.l.b16 %v749
    %1090 = vset.pattern.permute.xlu0 0
    %1091 = vperm.xlu0 %1090, %v1089
    %v1092 = vpop.permute.xlu0 %1091
    %v1093 = vlaneseq
    %v1094 = vshrl.u32 %v1093, 7
    %v1095 = vsub.s32 %v539, %v1094
    %v1096 = vrot.slane %v1092, %v1095
    %v1097 = vpack.c.b16 %v1096, %v1096
    %v1099 = vsel %vm587, %v1097, 0
    %v1102 = vsel %vm764, %v152, 0
    %1104 = vmatprep.subr.bf16.mxu0 0
    %1105 = vmatpush1.bf16.msra.mxu0 %v1102
    %1106 = vmatprep.subr.bf16.mxu0 0
    %1107 = vmatpush1.bf16.msra.mxu0 0
    %1108 = vmatprep.subr.bf16.mxu0 0
    %1109 = vmatpush1.bf16.msra.mxu0 0
    %1110 = vmatprep.subr.bf16.mxu0 0
    %1111 = vmatpush1.bf16.msra.mxu0 0
    %1112 = vmatprep.subr.bf16.mxu0 0
    %1113 = vmatpush1.bf16.msra.mxu0 0
    %1114 = vmatprep.subr.bf16.mxu0 0
    %1115 = vmatpush1.bf16.msra.mxu0 0
    %1116 = vmatprep.subr.bf16.mxu0 0
    %1117 = vmatpush1.bf16.msra.mxu0 0
    %1118 = vmatprep.subr.bf16.mxu0 0
    %1119 = vmatpush1.bf16.msra.mxu0 0
    %1120 = vmatprep.subr.bf16.mxu0 0
    %1121 = vmatpush1.bf16.msra.mxu0 0
    %1122 = vmatprep.subr.bf16.mxu0 0
    %1123 = vmatpush1.bf16.msra.mxu0 0
    %1124 = vmatprep.subr.bf16.mxu0 0
    %1125 = vmatpush1.bf16.msra.mxu0 0
    %1126 = vmatprep.subr.bf16.mxu0 0
    %1127 = vmatpush1.bf16.msra.mxu0 0
    %1128 = vmatprep.subr.bf16.mxu0 0
    %1129 = vmatpush1.bf16.msra.mxu0 0
    %1130 = vmatprep.subr.bf16.mxu0 0
    %1131 = vmatpush1.bf16.msra.mxu0 0
    %1132 = vmatprep.subr.bf16.mxu0 0
    %1133 = vmatpush1.bf16.msra.mxu0 0
    %1134 = vmatprep.subr.bf16.mxu0 0
    %1135 = vmatpush1.bf16.msra.mxu0 0
    %1136 = vmatprep.mubr.bf16.mxu0 0
    %1137 = vmatmul.mubr.bf16.gmra.mrb[0].mxu0 %v1099
    %v1138 = vpop.f32.mrb[0].mxu0
    %v1139 = vadd.f32 0.0, %v1138
    %v1140 = vpop.f32.mrb[0].mxu0
    %v1141 = vpop.f32.mrb[0].mxu0
    %v1142 = vpop.f32.mrb[0].mxu0
    %1143 = vdwg.mxu0
    %v1145 = vunpack.c.l.b16 %v750
    %1146 = vset.pattern.permute.xlu0 0
    %1147 = vperm.xlu0 %1146, %v1145
    %v1148 = vpop.permute.xlu0 %1147
    %v1149 = vlaneseq
    %v1150 = vshrl.u32 %v1149, 7
    %v1151 = vsub.s32 %v539, %v1150
    %v1152 = vrot.slane %v1148, %v1151
    %v1153 = vpack.c.b16 %v1152, %v1152
    %v1155 = vsel %vm587, %v1153, 0
    %v1158 = vsel %vm764, %v153, 0
    %1160 = vmatprep.subr.bf16.mxu0 0
    %1161 = vmatpush1.bf16.msra.mxu0 %v1158
    %1162 = vmatprep.subr.bf16.mxu0 0
    %1163 = vmatpush1.bf16.msra.mxu0 0
    %1164 = vmatprep.subr.bf16.mxu0 0
    %1165 = vmatpush1.bf16.msra.mxu0 0
    %1166 = vmatprep.subr.bf16.mxu0 0
    %1167 = vmatpush1.bf16.msra.mxu0 0
    %1168 = vmatprep.subr.bf16.mxu0 0
    %1169 = vmatpush1.bf16.msra.mxu0 0
    %1170 = vmatprep.subr.bf16.mxu0 0
    %1171 = vmatpush1.bf16.msra.mxu0 0
    %1172 = vmatprep.subr.bf16.mxu0 0
    %1173 = vmatpush1.bf16.msra.mxu0 0
    %1174 = vmatprep.subr.bf16.mxu0 0
    %1175 = vmatpush1.bf16.msra.mxu0 0
    %1176 = vmatprep.subr.bf16.mxu0 0
    %1177 = vmatpush1.bf16.msra.mxu0 0
    %1178 = vmatprep.subr.bf16.mxu0 0
    %1179 = vmatpush1.bf16.msra.mxu0 0
    %1180 = vmatprep.subr.bf16.mxu0 0
    %1181 = vmatpush1.bf16.msra.mxu0 0
    %1182 = vmatprep.subr.bf16.mxu0 0
    %1183 = vmatpush1.bf16.msra.mxu0 0
    %1184 = vmatprep.subr.bf16.mxu0 0
    %1185 = vmatpush1.bf16.msra.mxu0 0
    %1186 = vmatprep.subr.bf16.mxu0 0
    %1187 = vmatpush1.bf16.msra.mxu0 0
    %1188 = vmatprep.subr.bf16.mxu0 0
    %1189 = vmatpush1.bf16.msra.mxu0 0
    %1190 = vmatprep.subr.bf16.mxu0 0
    %1191 = vmatpush1.bf16.msra.mxu0 0
    %1192 = vmatprep.mubr.bf16.mxu0 0
    %1193 = vmatmul.mubr.bf16.gmra.mrb[0].mxu0 %v1155
    %v1194 = vpop.f32.mrb[0].mxu0
    %v1195 = vadd.f32 0.0, %v1194
    %v1196 = vpop.f32.mrb[0].mxu0
    %v1197 = vpop.f32.mrb[0].mxu0
    %v1198 = vpop.f32.mrb[0].mxu0
    %1199 = vdwg.mxu0
    %v1200 = vld [vmem:[#allocation5] sm:$0xff]
    %1202 = vset.pattern.permute.xlu0 0
    %1203 = vperm.xlu0 %1202, %v594
    %v1204 = vpop.permute.xlu0 %1203
    %v1206 = vmul.f32 %v1204, %v1200
    %v1215 = vrot.slane %v859, 7
    %v1216 = vsel %vm572, %v1215, %v803
    %v1217 = vrot.slane %v915, 6
    %v1218 = vsel %vm574, %v1217, %v1216
    %v1219 = vrot.slane %v971, 5
    %v1220 = vsel %vm576, %v1219, %v1218
    %v1221 = vrot.slane %v1027, 4
    %v1222 = vsel %vm578, %v1221, %v1220
    %v1223 = vrot.slane %v1083, 3
    %v1224 = vsel %vm580, %v1223, %v1222
    %v1225 = vrot.slane %v1139, 2
    %v1226 = vsel %vm582, %v1225, %v1224
    %v1227 = vrot.slane %v1195, 1
    %v1228 = vsel %vm584, %v1227, %v1226
    %v1230 = vadd.f32 %v1206, %v1228
    %1231 = vst.msk [vmem:[#allocation5] sm:$0xff] %vm197, %v1230
    %1232 = vst.msk [vmem:[#allocation3] sm:$0xff] %vm741, %v591
    // Predicated region
    $region54: #{tpu_custom_call.1} parent=1 // pred_check
      %p1233 = pneg %p76
    $region55: #{tpu_custom_call.1} parent=1 // pred_check_branch
      %1235 = sbr.rel (%p1233) target = $region57
    $region56: #{tpu_custom_call.1} parent=1 // pred_region
      %v1236 = vld [vmem:[#allocation5] sm:$0xff]
      %v1237 = vld [vmem:[#allocation4] sm:$0xff]
      %v1238 = vrcp.pop %v1237
      %1240 = vset.pattern.permute.xlu0 0
      %1241 = vperm.xlu0 %1240, %v1238
      %v1242 = vpop.permute.xlu0 %1241
      %v1244 = vmul.f32 %v1236, %v1242
      %1245 = vst.msk [vmem:[#allocation13] sm:$0xff] %vm197, %v1244
    $region57: #{tpu_custom_call.1} parent=1 // pred_fallthru
      _
    // Predicated region
    $region58: #{tpu_custom_call.1} parent=1 // pred_check
      _
    $region59: #{tpu_custom_call.1} parent=1 // pred_check_branch
      %1247 = sbr.rel (0) target = $region61
    $region60: #{tpu_custom_call.1} parent=1 // pred_region
      %s1249 = ssub.s32 128, 128
      %1250 = vsyncadd [#allocation9], %s1249
      %s1252 = sshll.u32 [#allocation13], 4
      %s1253 = int_to_ptr.vmem [resolvable:$true] %s1252
      %1255 = dma.vmem_to_hbm [thread:$0]  %s1253, 128, %s9, [#allocation9]
    $region61: #{tpu_custom_call.1} parent=1 // pred_fallthru
      _
    // Predicated region
    $region62: #{tpu_custom_call.1} parent=1 // pred_check
      _
    $region63: #{tpu_custom_call.1} parent=1 // pred_check_branch
      %1257 = sbr.rel (0) target = $region65
    $region64: #{tpu_custom_call.1} parent=1 // pred_region
      %1258 = dma.done [#allocation9], 128
    $region65: #{tpu_custom_call.1} parent=1 // pred_fallthru
      _
    %1259 = vsyncpa [#allocation8], 1
    %1260 = vsyncpa [#allocation11], 1
    %1261 = vsyncpa [#allocation9], 1

</llo_original>
